<compile_context>
chip_gen: v7x
topology: tpu7x:2x2x1
jax: 0.10.0
libtpu: 0.0.40
codegen_flags: <defaults>
</compile_context>

<pallas_src>
import functools
import math

import jax
import jax.numpy as jnp
from jax import lax
from jax.experimental import pallas as pl
from jax.experimental.pallas import tpu as pltpu


# --------------------------------------------------------------------------
# Fully fused kernel: multi-layer LSTM recurrence + MLP head.
# --------------------------------------------------------------------------
def _fused_lstm_mlp_kernel(n_lstm, n_lin, seq_len, *refs):
    # refs layout: x, (w_ih, w_hh, b)*n_lstm, (w, b)*n_lin, y, hs_scratch
    x_ref = refs[0]
    lstm_refs = [tuple(refs[1 + 3 * i: 4 + 3 * i]) for i in range(n_lstm)]
    off = 1 + 3 * n_lstm
    lin_refs = [tuple(refs[off + 2 * i: off + 2 + 2 * i]) for i in range(n_lin)]
    y_ref = refs[off + 2 * n_lin]
    hs_ref = refs[off + 2 * n_lin + 1]        # VMEM scratch (N, B, H)

    N = seq_len
    NB = x_ref.shape[0]
    B = NB // N                               # B is sublane-padded to 8

    x_cur = x_ref[...]                        # (N*B, Din), time-major rows
    h = None
    for li, (wih_ref, whh_ref, b_ref) in enumerate(lstm_refs):
        H = whh_ref.shape[0]
        whh = whh_ref[...]                    # hoisted: loaded once per layer
        bias = b_ref[...]                     # (1, 4H), hoisted out of loop
        # Input projection for ALL timesteps in a single MXU matmul, then
        # reshape to a leading time axis.  With B == 8 sublanes and
        # 4H == 128 lanes every xp[t] read is a clean (8,128) tile.
        xp = (jnp.dot(x_cur, wih_ref[...],
                      preferred_element_type=jnp.float32) + bias
              ).reshape(N, B, 4 * H)          # (N, B, 4H)
        h = jnp.zeros((B, H), jnp.float32)
        c = jnp.zeros((B, H), jnp.float32)
        last = (li == n_lstm - 1)
        # TODO(synk): further latency win — hold the loop-invariant W_hh in the
        # MXU weight registers across the time loop via
        # pltpu.matmul_push_rhs / matmul_acc_lhs / matmul_pop.
        for t in range(N):                    # N small & static -> unrolled
            gates = xp[t] + jnp.dot(h, whh,
                                    preferred_element_type=jnp.float32)  # (B,4H)
            # Whole-vreg transcendentals: 2 EUP ops on the full 128-lane tile
            # instead of 4 quarter-filled ones (gate order: i, f, g, o).
            sig = jax.nn.sigmoid(gates)
            tnh = jnp.tanh(gates)
            i_g = sig[:, 0 * H:1 * H]
            f_g = sig[:, 1 * H:2 * H]
            g_g = tnh[:, 2 * H:3 * H]
            o_g = sig[:, 3 * H:4 * H]
            c = f_g * c + i_g * g_g
            h = o_g * jnp.tanh(c)
            if not last:
                hs_ref[t] = h                 # per-step scratch write; no concat
        if not last:
            # Inter-layer hidden sequence stays on-chip (never touches HBM).
            x_cur = hs_ref[...].reshape(N * B, H)

    # MLP head: ReLU -> Linear -> ReLU -> [Linear -> ReLU -> Dropout]* -> Linear
    # (all dims lane-padded to 128 in the wrapper; zero padding is exact).
    y = jnp.maximum(h, 0.0)
    for li, (w_ref, b_ref) in enumerate(lin_refs):
        y = jnp.dot(y, w_ref[...], preferred_element_type=jnp.float32) + b_ref[...]
        if li < n_lin - 1:
            y = jnp.maximum(y, 0.0)
            # TODO(synk): nn.Dropout(p=0.2) is identity in eval mode; not applied.
    y_ref[...] = y.astype(y_ref.dtype)


def lstm_model_forward(x, lstm_params, linear_params):
    """x: (B, N, I) batch_first, like the PyTorch module. Returns (B, out)."""
    B, N, I = x.shape
    H = lstm_params[0][1].shape[0]            # w_hh stored transposed: (H, 4H)
    out_dim = linear_params[-1][0].shape[1]

    # ---- Lane-pad the MLP head: every Linear out-dim up to a multiple of 128.
    # Padded weight rows/cols and biases are zero, so inserted lanes stay
    # exactly 0 through ReLU and never leak into downstream layers.
    lin_params = []
    prev_pad = 0
    for (w, b) in linear_params:
        dout = w.shape[1]
        dpad = (-dout) % 128
        w = jnp.pad(w, ((0, prev_pad), (0, dpad)))
        b = jnp.pad(b, ((0, 0), (0, dpad)))
        lin_params.append((w, b))
        prev_pad = dpad
    out_pad = prev_pad

    # ---- Sublane-pad the batch to the f32 tile (8): every per-step block and
    # the single output store become full unmasked (8,128) tiles.
    B_pad = max(8, -(-B // 8) * 8)
    if B_pad != B:
        x = jnp.pad(x, ((0, B_pad - B), (0, 0), (0, 0)))

    # Time-major rows: row block [t*B_pad:(t+1)*B_pad] is timestep t.
    x_tm = jnp.transpose(x, (1, 0, 2)).reshape(N * B_pad, I).astype(jnp.float32)

    args = [x_tm]
    for p in lstm_params:
        args.extend(p)
    for p in lin_params:
        args.extend(p)

    vmem = pl.BlockSpec(memory_space=pltpu.MemorySpace.VMEM)
    kernel = functools.partial(_fused_lstm_mlp_kernel,
                               len(lstm_params), len(lin_params), N)
    y = pl.pallas_call(
        kernel,
        out_shape=jax.ShapeDtypeStruct((B_pad, out_dim + out_pad), jnp.float32),
        in_specs=[vmem] * len(args),
        out_specs=vmem,
        scratch_shapes=[pltpu.VMEM((N, B_pad, H), jnp.float32)],
        compiler_params=pltpu.CompilerParams(
            vmem_limit_bytes=32 * 1024 * 1024),
    )(*args)
    return y[:B, :out_dim]


# --------------------------------------------------------------------------
# Parameter initialization (deterministic; mimics PyTorch uniform(-k, k)).
# --------------------------------------------------------------------------
def init_params(key, input_size, output_size, lstm_hidden, lstm_num_layers,
                hidden, num_layers):
    lstm_params = []
    for l in range(lstm_num_layers):
        in_dim = input_size if l == 0 else lstm_hidden
        k = 1.0 / math.sqrt(lstm_hidden)
        key, k1, k2, k3, k4 = jax.random.split(key, 5)
        w_ih = jax.random.uniform(k1, (4 * lstm_hidden, in_dim), jnp.float32, -k, k)
        w_hh = jax.random.uniform(k2, (4 * lstm_hidden, lstm_hidden), jnp.float32, -k, k)
        b_ih = jax.random.uniform(k3, (4 * lstm_hidden,), jnp.float32, -k, k)
        b_hh = jax.random.uniform(k4, (4 * lstm_hidden,), jnp.float32, -k, k)
        lstm_params.append((w_ih.T, w_hh.T, (b_ih + b_hh)[None, :]))

    lin_dims = ([(lstm_hidden, hidden)]
                + [(hidden, hidden)] * num_layers
                + [(hidden, output_size)])
    linear_params = []
    for (din, dout) in lin_dims:
        k = 1.0 / math.sqrt(din)
        key, k1, k2 = jax.random.split(key, 3)
        w = jax.random.uniform(k1, (dout, din), jnp.float32, -k, k)
        b = jax.random.uniform(k2, (dout,), jnp.float32, -k, k)
        linear_params.append((w.T, b[None, :]))
    return lstm_params, linear_params


# --------------------------------------------------------------------------
# Pure-JAX reference (unfused) for correctness checking.
# --------------------------------------------------------------------------
def ref_forward(x, lstm_params, linear_params):
    h_seq = jnp.transpose(x, (1, 0, 2)).astype(jnp.float32)
    B = x.shape[0]
    for (w_ih_t, w_hh_t, b) in lstm_params:
        H = w_hh_t.shape[0]

        def step(carry, x_t):
            h, c = carry
            gates = x_t @ w_ih_t + h @ w_hh_t + b
            i, f, g, o = jnp.split(gates, 4, axis=-1)
            i = jax.nn.sigmoid(i)
            f = jax.nn.sigmoid(f)
            g = jnp.tanh(g)
            o = jax.nn.sigmoid(o)
            c = f * c + i * g
            h = o * jnp.tanh(c)
            return (h, c), h

        init = (jnp.zeros((B, H), jnp.float32), jnp.zeros((B, H), jnp.float32))
        _, h_seq = lax.scan(step, init, h_seq)
    h = jnp.maximum(h_seq[-1], 0.0)
    for idx, (w, bb) in enumerate(linear_params):
        h = h @ w + bb
        if idx < len(linear_params) - 1:
            h = jnp.maximum(h, 0.0)
    return h


if __name__ == "__main__":
    B, N = 4, 8
    input_size, output_size = 16, 8
    lstm_hidden_size, lstm_num_layers = 32, 2
    hidden_size, num_layers = 64, 2

    key = jax.random.PRNGKey(0)
    key, xkey, pkey = jax.random.split(key, 3)
    x = jax.random.normal(xkey, (B, N, input_size), jnp.float32)
    lstm_params, linear_params = init_params(
        pkey, input_size, output_size, lstm_hidden_size, lstm_num_layers,
        hidden_size, num_layers)

    fwd = jax.jit(lstm_model_forward)
    y = fwd(x, lstm_params, linear_params)
    y = jax.block_until_ready(y)

    y_ref = ref_forward(x, lstm_params, linear_params)
    assert y.shape == (B, output_size), y.shape
    assert jnp.allclose(y, y_ref, rtol=1e-3, atol=1e-3), (
        float(jnp.max(jnp.abs(y - y_ref))))

    print("KERNEL_OK")
</pallas_src>

<mosaic_0001>
module attributes {stable_mosaic.version = 11 : i64} {
  func.func @_fused_lstm_mlp_kernel(%arg0: memref<64x16xf32, #tpu.memory_space<vmem>>, %arg1: memref<16x128xf32, #tpu.memory_space<vmem>>, %arg2: memref<32x128xf32, #tpu.memory_space<vmem>>, %arg3: memref<1x128xf32, #tpu.memory_space<vmem>>, %arg4: memref<32x128xf32, #tpu.memory_space<vmem>>, %arg5: memref<32x128xf32, #tpu.memory_space<vmem>>, %arg6: memref<1x128xf32, #tpu.memory_space<vmem>>, %arg7: memref<32x128xf32, #tpu.memory_space<vmem>>, %arg8: memref<1x128xf32, #tpu.memory_space<vmem>>, %arg9: memref<128x128xf32, #tpu.memory_space<vmem>>, %arg10: memref<1x128xf32, #tpu.memory_space<vmem>>, %arg11: memref<128x128xf32, #tpu.memory_space<vmem>>, %arg12: memref<1x128xf32, #tpu.memory_space<vmem>>, %arg13: memref<128x128xf32, #tpu.memory_space<vmem>>, %arg14: memref<1x128xf32, #tpu.memory_space<vmem>>, %arg15: memref<8x128xf32, #tpu.memory_space<vmem>>, %arg16: memref<8x8x32xf32, #tpu.memory_space<vmem>>) attributes {dimension_semantics = [], scalar_prefetch = 0 : i64, scratch_operands = 1 : i64, tpu.core_type = #tpu.core_type<tc>} {
    %c0 = arith.constant 0 : index
    %c0_0 = arith.constant 0 : index
    %0 = vector.load %arg0[%c0, %c0_0] : memref<64x16xf32, #tpu.memory_space<vmem>>, vector<64x16xf32>
    %c0_1 = arith.constant 0 : index
    %c0_2 = arith.constant 0 : index
    %1 = vector.load %arg2[%c0_1, %c0_2] : memref<32x128xf32, #tpu.memory_space<vmem>>, vector<32x128xf32>
    %c0_3 = arith.constant 0 : index
    %c0_4 = arith.constant 0 : index
    %2 = vector.load %arg3[%c0_3, %c0_4] : memref<1x128xf32, #tpu.memory_space<vmem>>, vector<1x128xf32>
    %c0_5 = arith.constant 0 : index
    %c0_6 = arith.constant 0 : index
    %3 = vector.load %arg1[%c0_5, %c0_6] : memref<16x128xf32, #tpu.memory_space<vmem>>, vector<16x128xf32>
    %cst = arith.constant dense<0.000000e+00> : vector<64x128xf32>
    %4 = tpu.matmul %0, %3, %cst {dimension_numbers = #tpu.dot_dimension_numbers<[1], [0], [0], [1], [0, 0, 1, 1], [], []>} : vector<64x16xf32>, vector<16x128xf32>, vector<64x128xf32> -> vector<64x128xf32>
    %5 = vector.broadcast %2 : vector<1x128xf32> to vector<64x128xf32>
    %6 = arith.addf %4, %5 : vector<64x128xf32>
    %7 = vector.shape_cast %6 : vector<64x128xf32> to vector<8x8x128xf32>
    %cst_7 = arith.constant 0.000000e+00 : f32
    %8 = vector.broadcast %cst_7 : f32 to vector<8x32xf32>
    %cst_8 = arith.constant 0.000000e+00 : f32
    %9 = vector.broadcast %cst_8 : f32 to vector<8x32xf32>
    %10 = vector.extract_strided_slice %7 {offsets = [0, 0, 0], sizes = [1, 8, 128], strides = [1, 1, 1]} : vector<8x8x128xf32> to vector<1x8x128xf32>
    %11 = vector.shape_cast %10 : vector<1x8x128xf32> to vector<8x128xf32>
    %cst_9 = arith.constant dense<0.000000e+00> : vector<8x128xf32>
    %12 = tpu.matmul %8, %1, %cst_9 {dimension_numbers = #tpu.dot_dimension_numbers<[1], [0], [0], [1], [0, 0, 1, 1], [], []>} : vector<8x32xf32>, vector<32x128xf32>, vector<8x128xf32> -> vector<8x128xf32>
    %13 = arith.addf %11, %12 : vector<8x128xf32>
    %14 = arith.negf %13 : vector<8x128xf32>
    %15 = math.exp %14 : vector<8x128xf32>
    %cst_10 = arith.constant 1.000000e+00 : f32
    %16 = vector.broadcast %cst_10 : f32 to vector<8x128xf32>
    %17 = arith.addf %16, %15 : vector<8x128xf32>
    %18 = arith.divf %16, %17 : vector<8x128xf32>
    %19 = math.tanh %13 : vector<8x128xf32>
    %20 = vector.extract_strided_slice %18 {offsets = [0, 0], sizes = [8, 32], strides = [1, 1]} : vector<8x128xf32> to vector<8x32xf32>
    %21 = vector.extract_strided_slice %18 {offsets = [0, 32], sizes = [8, 32], strides = [1, 1]} : vector<8x128xf32> to vector<8x32xf32>
    %22 = vector.extract_strided_slice %19 {offsets = [0, 64], sizes = [8, 32], strides = [1, 1]} : vector<8x128xf32> to vector<8x32xf32>
    %23 = vector.extract_strided_slice %18 {offsets = [0, 96], sizes = [8, 32], strides = [1, 1]} : vector<8x128xf32> to vector<8x32xf32>
    %24 = arith.mulf %21, %9 : vector<8x32xf32>
    %25 = arith.mulf %20, %22 : vector<8x32xf32>
    %26 = arith.addf %24, %25 : vector<8x32xf32>
    %27 = math.tanh %26 : vector<8x32xf32>
    %28 = arith.mulf %23, %27 : vector<8x32xf32>
    %c0_11 = arith.constant 0 : index
    %c0_12 = arith.constant 0 : index
    %c0_13 = arith.constant 0 : index
    %29 = vector.load %arg16[%c0_11, %c0_12, %c0_13] : memref<8x8x32xf32, #tpu.memory_space<vmem>>, vector<1x8x32xf32>
    %30 = vector.shape_cast %29 : vector<1x8x32xf32> to vector<8x32xf32>
    %31 = vector.shape_cast %28 : vector<8x32xf32> to vector<1x8x32xf32>
    tpu.vector_store %arg16[%c0_11, %c0_12, %c0_13], %31 {strides = array<i32>} : memref<8x8x32xf32, #tpu.memory_space<vmem>>, vector<1x8x32xf32>,
    %32 = vector.extract_strided_slice %7 {offsets = [1, 0, 0], sizes = [1, 8, 128], strides = [1, 1, 1]} : vector<8x8x128xf32> to vector<1x8x128xf32>
    %33 = vector.shape_cast %32 : vector<1x8x128xf32> to vector<8x128xf32>
    %cst_14 = arith.constant dense<0.000000e+00> : vector<8x128xf32>
    %34 = tpu.matmul %28, %1, %cst_14 {dimension_numbers = #tpu.dot_dimension_numbers<[1], [0], [0], [1], [0, 0, 1, 1], [], []>} : vector<8x32xf32>, vector<32x128xf32>, vector<8x128xf32> -> vector<8x128xf32>
    %35 = arith.addf %33, %34 : vector<8x128xf32>
    %36 = arith.negf %35 : vector<8x128xf32>
    %37 = math.exp %36 : vector<8x128xf32>
    %cst_15 = arith.constant 1.000000e+00 : f32
    %38 = vector.broadcast %cst_15 : f32 to vector<8x128xf32>
    %39 = arith.addf %38, %37 : vector<8x128xf32>
    %40 = arith.divf %38, %39 : vector<8x128xf32>
    %41 = math.tanh %35 : vector<8x128xf32>
    %42 = vector.extract_strided_slice %40 {offsets = [0, 0], sizes = [8, 32], strides = [1, 1]} : vector<8x128xf32> to vector<8x32xf32>
    %43 = vector.extract_strided_slice %40 {offsets = [0, 32], sizes = [8, 32], strides = [1, 1]} : vector<8x128xf32> to vector<8x32xf32>
    %44 = vector.extract_strided_slice %41 {offsets = [0, 64], sizes = [8, 32], strides = [1, 1]} : vector<8x128xf32> to vector<8x32xf32>
    %45 = vector.extract_strided_slice %40 {offsets = [0, 96], sizes = [8, 32], strides = [1, 1]} : vector<8x128xf32> to vector<8x32xf32>
    %46 = arith.mulf %43, %26 : vector<8x32xf32>
    %47 = arith.mulf %42, %44 : vector<8x32xf32>
    %48 = arith.addf %46, %47 : vector<8x32xf32>
    %49 = math.tanh %48 : vector<8x32xf32>
    %50 = arith.mulf %45, %49 : vector<8x32xf32>
    %c1 = arith.constant 1 : index
    %c0_16 = arith.constant 0 : index
    %c0_17 = arith.constant 0 : index
    %51 = vector.load %arg16[%c1, %c0_16, %c0_17] : memref<8x8x32xf32, #tpu.memory_space<vmem>>, vector<1x8x32xf32>
    %52 = vector.shape_cast %51 : vector<1x8x32xf32> to vector<8x32xf32>
    %53 = vector.shape_cast %50 : vector<8x32xf32> to vector<1x8x32xf32>
    tpu.vector_store %arg16[%c1, %c0_16, %c0_17], %53 {strides = array<i32>} : memref<8x8x32xf32, #tpu.memory_space<vmem>>, vector<1x8x32xf32>,
    %54 = vector.extract_strided_slice %7 {offsets = [2, 0, 0], sizes = [1, 8, 128], strides = [1, 1, 1]} : vector<8x8x128xf32> to vector<1x8x128xf32>
    %55 = vector.shape_cast %54 : vector<1x8x128xf32> to vector<8x128xf32>
    %cst_18 = arith.constant dense<0.000000e+00> : vector<8x128xf32>
    %56 = tpu.matmul %50, %1, %cst_18 {dimension_numbers = #tpu.dot_dimension_numbers<[1], [0], [0], [1], [0, 0, 1, 1], [], []>} : vector<8x32xf32>, vector<32x128xf32>, vector<8x128xf32> -> vector<8x128xf32>
    %57 = arith.addf %55, %56 : vector<8x128xf32>
    %58 = arith.negf %57 : vector<8x128xf32>
    %59 = math.exp %58 : vector<8x128xf32>
    %cst_19 = arith.constant 1.000000e+00 : f32
    %60 = vector.broadcast %cst_19 : f32 to vector<8x128xf32>
    %61 = arith.addf %60, %59 : vector<8x128xf32>
    %62 = arith.divf %60, %61 : vector<8x128xf32>
    %63 = math.tanh %57 : vector<8x128xf32>
    %64 = vector.extract_strided_slice %62 {offsets = [0, 0], sizes = [8, 32], strides = [1, 1]} : vector<8x128xf32> to vector<8x32xf32>
    %65 = vector.extract_strided_slice %62 {offsets = [0, 32], sizes = [8, 32], strides = [1, 1]} : vector<8x128xf32> to vector<8x32xf32>
    %66 = vector.extract_strided_slice %63 {offsets = [0, 64], sizes = [8, 32], strides = [1, 1]} : vector<8x128xf32> to vector<8x32xf32>
    %67 = vector.extract_strided_slice %62 {offsets = [0, 96], sizes = [8, 32], strides = [1, 1]} : vector<8x128xf32> to vector<8x32xf32>
    %68 = arith.mulf %65, %48 : vector<8x32xf32>
    %69 = arith.mulf %64, %66 : vector<8x32xf32>
    %70 = arith.addf %68, %69 : vector<8x32xf32>
    %71 = math.tanh %70 : vector<8x32xf32>
    %72 = arith.mulf %67, %71 : vector<8x32xf32>
    %c2 = arith.constant 2 : index
    %c0_20 = arith.constant 0 : index
    %c0_21 = arith.constant 0 : index
    %73 = vector.load %arg16[%c2, %c0_20, %c0_21] : memref<8x8x32xf32, #tpu.memory_space<vmem>>, vector<1x8x32xf32>
    %74 = vector.shape_cast %73 : vector<1x8x32xf32> to vector<8x32xf32>
    %75 = vector.shape_cast %72 : vector<8x32xf32> to vector<1x8x32xf32>
    tpu.vector_store %arg16[%c2, %c0_20, %c0_21], %75 {strides = array<i32>} : memref<8x8x32xf32, #tpu.memory_space<vmem>>, vector<1x8x32xf32>,
    %76 = vector.extract_strided_slice %7 {offsets = [3, 0, 0], sizes = [1, 8, 128], strides = [1, 1, 1]} : vector<8x8x128xf32> to vector<1x8x128xf32>
    %77 = vector.shape_cast %76 : vector<1x8x128xf32> to vector<8x128xf32>
    %cst_22 = arith.constant dense<0.000000e+00> : vector<8x128xf32>
    %78 = tpu.matmul %72, %1, %cst_22 {dimension_numbers = #tpu.dot_dimension_numbers<[1], [0], [0], [1], [0, 0, 1, 1], [], []>} : vector<8x32xf32>, vector<32x128xf32>, vector<8x128xf32> -> vector<8x128xf32>
    %79 = arith.addf %77, %78 : vector<8x128xf32>
    %80 = arith.negf %79 : vector<8x128xf32>
    %81 = math.exp %80 : vector<8x128xf32>
    %cst_23 = arith.constant 1.000000e+00 : f32
    %82 = vector.broadcast %cst_23 : f32 to vector<8x128xf32>
    %83 = arith.addf %82, %81 : vector<8x128xf32>
    %84 = arith.divf %82, %83 : vector<8x128xf32>
    %85 = math.tanh %79 : vector<8x128xf32>
    %86 = vector.extract_strided_slice %84 {offsets = [0, 0], sizes = [8, 32], strides = [1, 1]} : vector<8x128xf32> to vector<8x32xf32>
    %87 = vector.extract_strided_slice %84 {offsets = [0, 32], sizes = [8, 32], strides = [1, 1]} : vector<8x128xf32> to vector<8x32xf32>
    %88 = vector.extract_strided_slice %85 {offsets = [0, 64], sizes = [8, 32], strides = [1, 1]} : vector<8x128xf32> to vector<8x32xf32>
    %89 = vector.extract_strided_slice %84 {offsets = [0, 96], sizes = [8, 32], strides = [1, 1]} : vector<8x128xf32> to vector<8x32xf32>
    %90 = arith.mulf %87, %70 : vector<8x32xf32>
    %91 = arith.mulf %86, %88 : vector<8x32xf32>
    %92 = arith.addf %90, %91 : vector<8x32xf32>
    %93 = math.tanh %92 : vector<8x32xf32>
    %94 = arith.mulf %89, %93 : vector<8x32xf32>
    %c3 = arith.constant 3 : index
    %c0_24 = arith.constant 0 : index
    %c0_25 = arith.constant 0 : index
    %95 = vector.load %arg16[%c3, %c0_24, %c0_25] : memref<8x8x32xf32, #tpu.memory_space<vmem>>, vector<1x8x32xf32>
    %96 = vector.shape_cast %95 : vector<1x8x32xf32> to vector<8x32xf32>
    %97 = vector.shape_cast %94 : vector<8x32xf32> to vector<1x8x32xf32>
    tpu.vector_store %arg16[%c3, %c0_24, %c0_25], %97 {strides = array<i32>} : memref<8x8x32xf32, #tpu.memory_space<vmem>>, vector<1x8x32xf32>,
    %98 = vector.extract_strided_slice %7 {offsets = [4, 0, 0], sizes = [1, 8, 128], strides = [1, 1, 1]} : vector<8x8x128xf32> to vector<1x8x128xf32>
    %99 = vector.shape_cast %98 : vector<1x8x128xf32> to vector<8x128xf32>
    %cst_26 = arith.constant dense<0.000000e+00> : vector<8x128xf32>
    %100 = tpu.matmul %94, %1, %cst_26 {dimension_numbers = #tpu.dot_dimension_numbers<[1], [0], [0], [1], [0, 0, 1, 1], [], []>} : vector<8x32xf32>, vector<32x128xf32>, vector<8x128xf32> -> vector<8x128xf32>
    %101 = arith.addf %99, %100 : vector<8x128xf32>
    %102 = arith.negf %101 : vector<8x128xf32>
    %103 = math.exp %102 : vector<8x128xf32>
    %cst_27 = arith.constant 1.000000e+00 : f32
    %104 = vector.broadcast %cst_27 : f32 to vector<8x128xf32>
    %105 = arith.addf %104, %103 : vector<8x128xf32>
    %106 = arith.divf %104, %105 : vector<8x128xf32>
    %107 = math.tanh %101 : vector<8x128xf32>
    %108 = vector.extract_strided_slice %106 {offsets = [0, 0], sizes = [8, 32], strides = [1, 1]} : vector<8x128xf32> to vector<8x32xf32>
    %109 = vector.extract_strided_slice %106 {offsets = [0, 32], sizes = [8, 32], strides = [1, 1]} : vector<8x128xf32> to vector<8x32xf32>
    %110 = vector.extract_strided_slice %107 {offsets = [0, 64], sizes = [8, 32], strides = [1, 1]} : vector<8x128xf32> to vector<8x32xf32>
    %111 = vector.extract_strided_slice %106 {offsets = [0, 96], sizes = [8, 32], strides = [1, 1]} : vector<8x128xf32> to vector<8x32xf32>
    %112 = arith.mulf %109, %92 : vector<8x32xf32>
    %113 = arith.mulf %108, %110 : vector<8x32xf32>
    %114 = arith.addf %112, %113 : vector<8x32xf32>
    %115 = math.tanh %114 : vector<8x32xf32>
    %116 = arith.mulf %111, %115 : vector<8x32xf32>
    %c4 = arith.constant 4 : index
    %c0_28 = arith.constant 0 : index
    %c0_29 = arith.constant 0 : index
    %117 = vector.load %arg16[%c4, %c0_28, %c0_29] : memref<8x8x32xf32, #tpu.memory_space<vmem>>, vector<1x8x32xf32>
    %118 = vector.shape_cast %117 : vector<1x8x32xf32> to vector<8x32xf32>
    %119 = vector.shape_cast %116 : vector<8x32xf32> to vector<1x8x32xf32>
    tpu.vector_store %arg16[%c4, %c0_28, %c0_29], %119 {strides = array<i32>} : memref<8x8x32xf32, #tpu.memory_space<vmem>>, vector<1x8x32xf32>,
    %120 = vector.extract_strided_slice %7 {offsets = [5, 0, 0], sizes = [1, 8, 128], strides = [1, 1, 1]} : vector<8x8x128xf32> to vector<1x8x128xf32>
    %121 = vector.shape_cast %120 : vector<1x8x128xf32> to vector<8x128xf32>
    %cst_30 = arith.constant dense<0.000000e+00> : vector<8x128xf32>
    %122 = tpu.matmul %116, %1, %cst_30 {dimension_numbers = #tpu.dot_dimension_numbers<[1], [0], [0], [1], [0, 0, 1, 1], [], []>} : vector<8x32xf32>, vector<32x128xf32>, vector<8x128xf32> -> vector<8x128xf32>
    %123 = arith.addf %121, %122 : vector<8x128xf32>
    %124 = arith.negf %123 : vector<8x128xf32>
    %125 = math.exp %124 : vector<8x128xf32>
    %cst_31 = arith.constant 1.000000e+00 : f32
    %126 = vector.broadcast %cst_31 : f32 to vector<8x128xf32>
    %127 = arith.addf %126, %125 : vector<8x128xf32>
    %128 = arith.divf %126, %127 : vector<8x128xf32>
    %129 = math.tanh %123 : vector<8x128xf32>
    %130 = vector.extract_strided_slice %128 {offsets = [0, 0], sizes = [8, 32], strides = [1, 1]} : vector<8x128xf32> to vector<8x32xf32>
    %131 = vector.extract_strided_slice %128 {offsets = [0, 32], sizes = [8, 32], strides = [1, 1]} : vector<8x128xf32> to vector<8x32xf32>
    %132 = vector.extract_strided_slice %129 {offsets = [0, 64], sizes = [8, 32], strides = [1, 1]} : vector<8x128xf32> to vector<8x32xf32>
    %133 = vector.extract_strided_slice %128 {offsets = [0, 96], sizes = [8, 32], strides = [1, 1]} : vector<8x128xf32> to vector<8x32xf32>
    %134 = arith.mulf %131, %114 : vector<8x32xf32>
    %135 = arith.mulf %130, %132 : vector<8x32xf32>
    %136 = arith.addf %134, %135 : vector<8x32xf32>
    %137 = math.tanh %136 : vector<8x32xf32>
    %138 = arith.mulf %133, %137 : vector<8x32xf32>
    %c5 = arith.constant 5 : index
    %c0_32 = arith.constant 0 : index
    %c0_33 = arith.constant 0 : index
    %139 = vector.load %arg16[%c5, %c0_32, %c0_33] : memref<8x8x32xf32, #tpu.memory_space<vmem>>, vector<1x8x32xf32>
    %140 = vector.shape_cast %139 : vector<1x8x32xf32> to vector<8x32xf32>
    %141 = vector.shape_cast %138 : vector<8x32xf32> to vector<1x8x32xf32>
    tpu.vector_store %arg16[%c5, %c0_32, %c0_33], %141 {strides = array<i32>} : memref<8x8x32xf32, #tpu.memory_space<vmem>>, vector<1x8x32xf32>,
    %142 = vector.extract_strided_slice %7 {offsets = [6, 0, 0], sizes = [1, 8, 128], strides = [1, 1, 1]} : vector<8x8x128xf32> to vector<1x8x128xf32>
    %143 = vector.shape_cast %142 : vector<1x8x128xf32> to vector<8x128xf32>
    %cst_34 = arith.constant dense<0.000000e+00> : vector<8x128xf32>
    %144 = tpu.matmul %138, %1, %cst_34 {dimension_numbers = #tpu.dot_dimension_numbers<[1], [0], [0], [1], [0, 0, 1, 1], [], []>} : vector<8x32xf32>, vector<32x128xf32>, vector<8x128xf32> -> vector<8x128xf32>
    %145 = arith.addf %143, %144 : vector<8x128xf32>
    %146 = arith.negf %145 : vector<8x128xf32>
    %147 = math.exp %146 : vector<8x128xf32>
    %cst_35 = arith.constant 1.000000e+00 : f32
    %148 = vector.broadcast %cst_35 : f32 to vector<8x128xf32>
    %149 = arith.addf %148, %147 : vector<8x128xf32>
    %150 = arith.divf %148, %149 : vector<8x128xf32>
    %151 = math.tanh %145 : vector<8x128xf32>
    %152 = vector.extract_strided_slice %150 {offsets = [0, 0], sizes = [8, 32], strides = [1, 1]} : vector<8x128xf32> to vector<8x32xf32>
    %153 = vector.extract_strided_slice %150 {offsets = [0, 32], sizes = [8, 32], strides = [1, 1]} : vector<8x128xf32> to vector<8x32xf32>
    %154 = vector.extract_strided_slice %151 {offsets = [0, 64], sizes = [8, 32], strides = [1, 1]} : vector<8x128xf32> to vector<8x32xf32>
    %155 = vector.extract_strided_slice %150 {offsets = [0, 96], sizes = [8, 32], strides = [1, 1]} : vector<8x128xf32> to vector<8x32xf32>
    %156 = arith.mulf %153, %136 : vector<8x32xf32>
    %157 = arith.mulf %152, %154 : vector<8x32xf32>
    %158 = arith.addf %156, %157 : vector<8x32xf32>
    %159 = math.tanh %158 : vector<8x32xf32>
    %160 = arith.mulf %155, %159 : vector<8x32xf32>
    %c6 = arith.constant 6 : index
    %c0_36 = arith.constant 0 : index
    %c0_37 = arith.constant 0 : index
    %161 = vector.load %arg16[%c6, %c0_36, %c0_37] : memref<8x8x32xf32, #tpu.memory_space<vmem>>, vector<1x8x32xf32>
    %162 = vector.shape_cast %161 : vector<1x8x32xf32> to vector<8x32xf32>
    %163 = vector.shape_cast %160 : vector<8x32xf32> to vector<1x8x32xf32>
    tpu.vector_store %arg16[%c6, %c0_36, %c0_37], %163 {strides = array<i32>} : memref<8x8x32xf32, #tpu.memory_space<vmem>>, vector<1x8x32xf32>,
    %164 = vector.extract_strided_slice %7 {offsets = [7, 0, 0], sizes = [1, 8, 128], strides = [1, 1, 1]} : vector<8x8x128xf32> to vector<1x8x128xf32>
    %165 = vector.shape_cast %164 : vector<1x8x128xf32> to vector<8x128xf32>
    %cst_38 = arith.constant dense<0.000000e+00> : vector<8x128xf32>
    %166 = tpu.matmul %160, %1, %cst_38 {dimension_numbers = #tpu.dot_dimension_numbers<[1], [0], [0], [1], [0, 0, 1, 1], [], []>} : vector<8x32xf32>, vector<32x128xf32>, vector<8x128xf32> -> vector<8x128xf32>
    %167 = arith.addf %165, %166 : vector<8x128xf32>
    %168 = arith.negf %167 : vector<8x128xf32>
    %169 = math.exp %168 : vector<8x128xf32>
    %cst_39 = arith.constant 1.000000e+00 : f32
    %170 = vector.broadcast %cst_39 : f32 to vector<8x128xf32>
    %171 = arith.addf %170, %169 : vector<8x128xf32>
    %172 = arith.divf %170, %171 : vector<8x128xf32>
    %173 = math.tanh %167 : vector<8x128xf32>
    %174 = vector.extract_strided_slice %172 {offsets = [0, 0], sizes = [8, 32], strides = [1, 1]} : vector<8x128xf32> to vector<8x32xf32>
    %175 = vector.extract_strided_slice %172 {offsets = [0, 32], sizes = [8, 32], strides = [1, 1]} : vector<8x128xf32> to vector<8x32xf32>
    %176 = vector.extract_strided_slice %173 {offsets = [0, 64], sizes = [8, 32], strides = [1, 1]} : vector<8x128xf32> to vector<8x32xf32>
    %177 = vector.extract_strided_slice %172 {offsets = [0, 96], sizes = [8, 32], strides = [1, 1]} : vector<8x128xf32> to vector<8x32xf32>
    %178 = arith.mulf %175, %158 : vector<8x32xf32>
    %179 = arith.mulf %174, %176 : vector<8x32xf32>
    %180 = arith.addf %178, %179 : vector<8x32xf32>
    %181 = math.tanh %180 : vector<8x32xf32>
    %182 = arith.mulf %177, %181 : vector<8x32xf32>
    %c7 = arith.constant 7 : index
    %c0_40 = arith.constant 0 : index
    %c0_41 = arith.constant 0 : index
    %183 = vector.load %arg16[%c7, %c0_40, %c0_41] : memref<8x8x32xf32, #tpu.memory_space<vmem>>, vector<1x8x32xf32>
    %184 = vector.shape_cast %183 : vector<1x8x32xf32> to vector<8x32xf32>
    %185 = vector.shape_cast %182 : vector<8x32xf32> to vector<1x8x32xf32>
    tpu.vector_store %arg16[%c7, %c0_40, %c0_41], %185 {strides = array<i32>} : memref<8x8x32xf32, #tpu.memory_space<vmem>>, vector<1x8x32xf32>,
    %c0_42 = arith.constant 0 : index
    %c0_43 = arith.constant 0 : index
    %c0_44 = arith.constant 0 : index
    %186 = vector.load %arg16[%c0_42, %c0_43, %c0_44] : memref<8x8x32xf32, #tpu.memory_space<vmem>>, vector<8x8x32xf32>
    %187 = vector.shape_cast %186 : vector<8x8x32xf32> to vector<64x32xf32>
    %c0_45 = arith.constant 0 : index
    %c0_46 = arith.constant 0 : index
    %188 = vector.load %arg5[%c0_45, %c0_46] : memref<32x128xf32, #tpu.memory_space<vmem>>, vector<32x128xf32>
    %c0_47 = arith.constant 0 : index
    %c0_48 = arith.constant 0 : index
    %189 = vector.load %arg6[%c0_47, %c0_48] : memref<1x128xf32, #tpu.memory_space<vmem>>, vector<1x128xf32>
    %c0_49 = arith.constant 0 : index
    %c0_50 = arith.constant 0 : index
    %190 = vector.load %arg4[%c0_49, %c0_50] : memref<32x128xf32, #tpu.memory_space<vmem>>, vector<32x128xf32>
    %cst_51 = arith.constant dense<0.000000e+00> : vector<64x128xf32>
    %191 = tpu.matmul %187, %190, %cst_51 {dimension_numbers = #tpu.dot_dimension_numbers<[1], [0], [0], [1], [0, 0, 1, 1], [], []>} : vector<64x32xf32>, vector<32x128xf32>, vector<64x128xf32> -> vector<64x128xf32>
    %192 = vector.broadcast %189 : vector<1x128xf32> to vector<64x128xf32>
    %193 = arith.addf %191, %192 : vector<64x128xf32>
    %194 = vector.shape_cast %193 : vector<64x128xf32> to vector<8x8x128xf32>
    %cst_52 = arith.constant 0.000000e+00 : f32
    %195 = vector.broadcast %cst_52 : f32 to vector<8x32xf32>
    %cst_53 = arith.constant 0.000000e+00 : f32
    %196 = vector.broadcast %cst_53 : f32 to vector<8x32xf32>
    %197 = vector.extract_strided_slice %194 {offsets = [0, 0, 0], sizes = [1, 8, 128], strides = [1, 1, 1]} : vector<8x8x128xf32> to vector<1x8x128xf32>
    %198 = vector.shape_cast %197 : vector<1x8x128xf32> to vector<8x128xf32>
    %cst_54 = arith.constant dense<0.000000e+00> : vector<8x128xf32>
    %199 = tpu.matmul %195, %188, %cst_54 {dimension_numbers = #tpu.dot_dimension_numbers<[1], [0], [0], [1], [0, 0, 1, 1], [], []>} : vector<8x32xf32>, vector<32x128xf32>, vector<8x128xf32> -> vector<8x128xf32>
    %200 = arith.addf %198, %199 : vector<8x128xf32>
    %201 = arith.negf %200 : vector<8x128xf32>
    %202 = math.exp %201 : vector<8x128xf32>
    %cst_55 = arith.constant 1.000000e+00 : f32
    %203 = vector.broadcast %cst_55 : f32 to vector<8x128xf32>
    %204 = arith.addf %203, %202 : vector<8x128xf32>
    %205 = arith.divf %203, %204 : vector<8x128xf32>
    %206 = math.tanh %200 : vector<8x128xf32>
    %207 = vector.extract_strided_slice %205 {offsets = [0, 0], sizes = [8, 32], strides = [1, 1]} : vector<8x128xf32> to vector<8x32xf32>
    %208 = vector.extract_strided_slice %205 {offsets = [0, 32], sizes = [8, 32], strides = [1, 1]} : vector<8x128xf32> to vector<8x32xf32>
    %209 = vector.extract_strided_slice %206 {offsets = [0, 64], sizes = [8, 32], strides = [1, 1]} : vector<8x128xf32> to vector<8x32xf32>
    %210 = vector.extract_strided_slice %205 {offsets = [0, 96], sizes = [8, 32], strides = [1, 1]} : vector<8x128xf32> to vector<8x32xf32>
    %211 = arith.mulf %208, %196 : vector<8x32xf32>
    %212 = arith.mulf %207, %209 : vector<8x32xf32>
    %213 = arith.addf %211, %212 : vector<8x32xf32>
    %214 = math.tanh %213 : vector<8x32xf32>
    %215 = arith.mulf %210, %214 : vector<8x32xf32>
    %216 = vector.extract_strided_slice %194 {offsets = [1, 0, 0], sizes = [1, 8, 128], strides = [1, 1, 1]} : vector<8x8x128xf32> to vector<1x8x128xf32>
    %217 = vector.shape_cast %216 : vector<1x8x128xf32> to vector<8x128xf32>
    %cst_56 = arith.constant dense<0.000000e+00> : vector<8x128xf32>
    %218 = tpu.matmul %215, %188, %cst_56 {dimension_numbers = #tpu.dot_dimension_numbers<[1], [0], [0], [1], [0, 0, 1, 1], [], []>} : vector<8x32xf32>, vector<32x128xf32>, vector<8x128xf32> -> vector<8x128xf32>
    %219 = arith.addf %217, %218 : vector<8x128xf32>
    %220 = arith.negf %219 : vector<8x128xf32>
    %221 = math.exp %220 : vector<8x128xf32>
    %cst_57 = arith.constant 1.000000e+00 : f32
    %222 = vector.broadcast %cst_57 : f32 to vector<8x128xf32>
    %223 = arith.addf %222, %221 : vector<8x128xf32>
    %224 = arith.divf %222, %223 : vector<8x128xf32>
    %225 = math.tanh %219 : vector<8x128xf32>
    %226 = vector.extract_strided_slice %224 {offsets = [0, 0], sizes = [8, 32], strides = [1, 1]} : vector<8x128xf32> to vector<8x32xf32>
    %227 = vector.extract_strided_slice %224 {offsets = [0, 32], sizes = [8, 32], strides = [1, 1]} : vector<8x128xf32> to vector<8x32xf32>
    %228 = vector.extract_strided_slice %225 {offsets = [0, 64], sizes = [8, 32], strides = [1, 1]} : vector<8x128xf32> to vector<8x32xf32>
    %229 = vector.extract_strided_slice %224 {offsets = [0, 96], sizes = [8, 32], strides = [1, 1]} : vector<8x128xf32> to vector<8x32xf32>
    %230 = arith.mulf %227, %213 : vector<8x32xf32>
    %231 = arith.mulf %226, %228 : vector<8x32xf32>
    %232 = arith.addf %230, %231 : vector<8x32xf32>
    %233 = math.tanh %232 : vector<8x32xf32>
    %234 = arith.mulf %229, %233 : vector<8x32xf32>
    %235 = vector.extract_strided_slice %194 {offsets = [2, 0, 0], sizes = [1, 8, 128], strides = [1, 1, 1]} : vector<8x8x128xf32> to vector<1x8x128xf32>
    %236 = vector.shape_cast %235 : vector<1x8x128xf32> to vector<8x128xf32>
    %cst_58 = arith.constant dense<0.000000e+00> : vector<8x128xf32>
    %237 = tpu.matmul %234, %188, %cst_58 {dimension_numbers = #tpu.dot_dimension_numbers<[1], [0], [0], [1], [0, 0, 1, 1], [], []>} : vector<8x32xf32>, vector<32x128xf32>, vector<8x128xf32> -> vector<8x128xf32>
    %238 = arith.addf %236, %237 : vector<8x128xf32>
    %239 = arith.negf %238 : vector<8x128xf32>
    %240 = math.exp %239 : vector<8x128xf32>
    %cst_59 = arith.constant 1.000000e+00 : f32
    %241 = vector.broadcast %cst_59 : f32 to vector<8x128xf32>
    %242 = arith.addf %241, %240 : vector<8x128xf32>
    %243 = arith.divf %241, %242 : vector<8x128xf32>
    %244 = math.tanh %238 : vector<8x128xf32>
    %245 = vector.extract_strided_slice %243 {offsets = [0, 0], sizes = [8, 32], strides = [1, 1]} : vector<8x128xf32> to vector<8x32xf32>
    %246 = vector.extract_strided_slice %243 {offsets = [0, 32], sizes = [8, 32], strides = [1, 1]} : vector<8x128xf32> to vector<8x32xf32>
    %247 = vector.extract_strided_slice %244 {offsets = [0, 64], sizes = [8, 32], strides = [1, 1]} : vector<8x128xf32> to vector<8x32xf32>
    %248 = vector.extract_strided_slice %243 {offsets = [0, 96], sizes = [8, 32], strides = [1, 1]} : vector<8x128xf32> to vector<8x32xf32>
    %249 = arith.mulf %246, %232 : vector<8x32xf32>
    %250 = arith.mulf %245, %247 : vector<8x32xf32>
    %251 = arith.addf %249, %250 : vector<8x32xf32>
    %252 = math.tanh %251 : vector<8x32xf32>
    %253 = arith.mulf %248, %252 : vector<8x32xf32>
    %254 = vector.extract_strided_slice %194 {offsets = [3, 0, 0], sizes = [1, 8, 128], strides = [1, 1, 1]} : vector<8x8x128xf32> to vector<1x8x128xf32>
    %255 = vector.shape_cast %254 : vector<1x8x128xf32> to vector<8x128xf32>
    %cst_60 = arith.constant dense<0.000000e+00> : vector<8x128xf32>
    %256 = tpu.matmul %253, %188, %cst_60 {dimension_numbers = #tpu.dot_dimension_numbers<[1], [0], [0], [1], [0, 0, 1, 1], [], []>} : vector<8x32xf32>, vector<32x128xf32>, vector<8x128xf32> -> vector<8x128xf32>
    %257 = arith.addf %255, %256 : vector<8x128xf32>
    %258 = arith.negf %257 : vector<8x128xf32>
    %259 = math.exp %258 : vector<8x128xf32>
    %cst_61 = arith.constant 1.000000e+00 : f32
    %260 = vector.broadcast %cst_61 : f32 to vector<8x128xf32>
    %261 = arith.addf %260, %259 : vector<8x128xf32>
    %262 = arith.divf %260, %261 : vector<8x128xf32>
    %263 = math.tanh %257 : vector<8x128xf32>
    %264 = vector.extract_strided_slice %262 {offsets = [0, 0], sizes = [8, 32], strides = [1, 1]} : vector<8x128xf32> to vector<8x32xf32>
    %265 = vector.extract_strided_slice %262 {offsets = [0, 32], sizes = [8, 32], strides = [1, 1]} : vector<8x128xf32> to vector<8x32xf32>
    %266 = vector.extract_strided_slice %263 {offsets = [0, 64], sizes = [8, 32], strides = [1, 1]} : vector<8x128xf32> to vector<8x32xf32>
    %267 = vector.extract_strided_slice %262 {offsets = [0, 96], sizes = [8, 32], strides = [1, 1]} : vector<8x128xf32> to vector<8x32xf32>
    %268 = arith.mulf %265, %251 : vector<8x32xf32>
    %269 = arith.mulf %264, %266 : vector<8x32xf32>
    %270 = arith.addf %268, %269 : vector<8x32xf32>
    %271 = math.tanh %270 : vector<8x32xf32>
    %272 = arith.mulf %267, %271 : vector<8x32xf32>
    %273 = vector.extract_strided_slice %194 {offsets = [4, 0, 0], sizes = [1, 8, 128], strides = [1, 1, 1]} : vector<8x8x128xf32> to vector<1x8x128xf32>
    %274 = vector.shape_cast %273 : vector<1x8x128xf32> to vector<8x128xf32>
    %cst_62 = arith.constant dense<0.000000e+00> : vector<8x128xf32>
    %275 = tpu.matmul %272, %188, %cst_62 {dimension_numbers = #tpu.dot_dimension_numbers<[1], [0], [0], [1], [0, 0, 1, 1], [], []>} : vector<8x32xf32>, vector<32x128xf32>, vector<8x128xf32> -> vector<8x128xf32>
    %276 = arith.addf %274, %275 : vector<8x128xf32>
    %277 = arith.negf %276 : vector<8x128xf32>
    %278 = math.exp %277 : vector<8x128xf32>
    %cst_63 = arith.constant 1.000000e+00 : f32
    %279 = vector.broadcast %cst_63 : f32 to vector<8x128xf32>
    %280 = arith.addf %279, %278 : vector<8x128xf32>
    %281 = arith.divf %279, %280 : vector<8x128xf32>
    %282 = math.tanh %276 : vector<8x128xf32>
    %283 = vector.extract_strided_slice %281 {offsets = [0, 0], sizes = [8, 32], strides = [1, 1]} : vector<8x128xf32> to vector<8x32xf32>
    %284 = vector.extract_strided_slice %281 {offsets = [0, 32], sizes = [8, 32], strides = [1, 1]} : vector<8x128xf32> to vector<8x32xf32>
    %285 = vector.extract_strided_slice %282 {offsets = [0, 64], sizes = [8, 32], strides = [1, 1]} : vector<8x128xf32> to vector<8x32xf32>
    %286 = vector.extract_strided_slice %281 {offsets = [0, 96], sizes = [8, 32], strides = [1, 1]} : vector<8x128xf32> to vector<8x32xf32>
    %287 = arith.mulf %284, %270 : vector<8x32xf32>
    %288 = arith.mulf %283, %285 : vector<8x32xf32>
    %289 = arith.addf %287, %288 : vector<8x32xf32>
    %290 = math.tanh %289 : vector<8x32xf32>
    %291 = arith.mulf %286, %290 : vector<8x32xf32>
    %292 = vector.extract_strided_slice %194 {offsets = [5, 0, 0], sizes = [1, 8, 128], strides = [1, 1, 1]} : vector<8x8x128xf32> to vector<1x8x128xf32>
    %293 = vector.shape_cast %292 : vector<1x8x128xf32> to vector<8x128xf32>
    %cst_64 = arith.constant dense<0.000000e+00> : vector<8x128xf32>
    %294 = tpu.matmul %291, %188, %cst_64 {dimension_numbers = #tpu.dot_dimension_numbers<[1], [0], [0], [1], [0, 0, 1, 1], [], []>} : vector<8x32xf32>, vector<32x128xf32>, vector<8x128xf32> -> vector<8x128xf32>
    %295 = arith.addf %293, %294 : vector<8x128xf32>
    %296 = arith.negf %295 : vector<8x128xf32>
    %297 = math.exp %296 : vector<8x128xf32>
    %cst_65 = arith.constant 1.000000e+00 : f32
    %298 = vector.broadcast %cst_65 : f32 to vector<8x128xf32>
    %299 = arith.addf %298, %297 : vector<8x128xf32>
    %300 = arith.divf %298, %299 : vector<8x128xf32>
    %301 = math.tanh %295 : vector<8x128xf32>
    %302 = vector.extract_strided_slice %300 {offsets = [0, 0], sizes = [8, 32], strides = [1, 1]} : vector<8x128xf32> to vector<8x32xf32>
    %303 = vector.extract_strided_slice %300 {offsets = [0, 32], sizes = [8, 32], strides = [1, 1]} : vector<8x128xf32> to vector<8x32xf32>
    %304 = vector.extract_strided_slice %301 {offsets = [0, 64], sizes = [8, 32], strides = [1, 1]} : vector<8x128xf32> to vector<8x32xf32>
    %305 = vector.extract_strided_slice %300 {offsets = [0, 96], sizes = [8, 32], strides = [1, 1]} : vector<8x128xf32> to vector<8x32xf32>
    %306 = arith.mulf %303, %289 : vector<8x32xf32>
    %307 = arith.mulf %302, %304 : vector<8x32xf32>
    %308 = arith.addf %306, %307 : vector<8x32xf32>
    %309 = math.tanh %308 : vector<8x32xf32>
    %310 = arith.mulf %305, %309 : vector<8x32xf32>
    %311 = vector.extract_strided_slice %194 {offsets = [6, 0, 0], sizes = [1, 8, 128], strides = [1, 1, 1]} : vector<8x8x128xf32> to vector<1x8x128xf32>
    %312 = vector.shape_cast %311 : vector<1x8x128xf32> to vector<8x128xf32>
    %cst_66 = arith.constant dense<0.000000e+00> : vector<8x128xf32>
    %313 = tpu.matmul %310, %188, %cst_66 {dimension_numbers = #tpu.dot_dimension_numbers<[1], [0], [0], [1], [0, 0, 1, 1], [], []>} : vector<8x32xf32>, vector<32x128xf32>, vector<8x128xf32> -> vector<8x128xf32>
    %314 = arith.addf %312, %313 : vector<8x128xf32>
    %315 = arith.negf %314 : vector<8x128xf32>
    %316 = math.exp %315 : vector<8x128xf32>
    %cst_67 = arith.constant 1.000000e+00 : f32
    %317 = vector.broadcast %cst_67 : f32 to vector<8x128xf32>
    %318 = arith.addf %317, %316 : vector<8x128xf32>
    %319 = arith.divf %317, %318 : vector<8x128xf32>
    %320 = math.tanh %314 : vector<8x128xf32>
    %321 = vector.extract_strided_slice %319 {offsets = [0, 0], sizes = [8, 32], strides = [1, 1]} : vector<8x128xf32> to vector<8x32xf32>
    %322 = vector.extract_strided_slice %319 {offsets = [0, 32], sizes = [8, 32], strides = [1, 1]} : vector<8x128xf32> to vector<8x32xf32>
    %323 = vector.extract_strided_slice %320 {offsets = [0, 64], sizes = [8, 32], strides = [1, 1]} : vector<8x128xf32> to vector<8x32xf32>
    %324 = vector.extract_strided_slice %319 {offsets = [0, 96], sizes = [8, 32], strides = [1, 1]} : vector<8x128xf32> to vector<8x32xf32>
    %325 = arith.mulf %322, %308 : vector<8x32xf32>
    %326 = arith.mulf %321, %323 : vector<8x32xf32>
    %327 = arith.addf %325, %326 : vector<8x32xf32>
    %328 = math.tanh %327 : vector<8x32xf32>
    %329 = arith.mulf %324, %328 : vector<8x32xf32>
    %330 = vector.extract_strided_slice %194 {offsets = [7, 0, 0], sizes = [1, 8, 128], strides = [1, 1, 1]} : vector<8x8x128xf32> to vector<1x8x128xf32>
    %331 = vector.shape_cast %330 : vector<1x8x128xf32> to vector<8x128xf32>
    %cst_68 = arith.constant dense<0.000000e+00> : vector<8x128xf32>
    %332 = tpu.matmul %329, %188, %cst_68 {dimension_numbers = #tpu.dot_dimension_numbers<[1], [0], [0], [1], [0, 0, 1, 1], [], []>} : vector<8x32xf32>, vector<32x128xf32>, vector<8x128xf32> -> vector<8x128xf32>
    %333 = arith.addf %331, %332 : vector<8x128xf32>
    %334 = arith.negf %333 : vector<8x128xf32>
    %335 = math.exp %334 : vector<8x128xf32>
    %cst_69 = arith.constant 1.000000e+00 : f32
    %336 = vector.broadcast %cst_69 : f32 to vector<8x128xf32>
    %337 = arith.addf %336, %335 : vector<8x128xf32>
    %338 = arith.divf %336, %337 : vector<8x128xf32>
    %339 = math.tanh %333 : vector<8x128xf32>
    %340 = vector.extract_strided_slice %338 {offsets = [0, 0], sizes = [8, 32], strides = [1, 1]} : vector<8x128xf32> to vector<8x32xf32>
    %341 = vector.extract_strided_slice %338 {offsets = [0, 32], sizes = [8, 32], strides = [1, 1]} : vector<8x128xf32> to vector<8x32xf32>
    %342 = vector.extract_strided_slice %339 {offsets = [0, 64], sizes = [8, 32], strides = [1, 1]} : vector<8x128xf32> to vector<8x32xf32>
    %343 = vector.extract_strided_slice %338 {offsets = [0, 96], sizes = [8, 32], strides = [1, 1]} : vector<8x128xf32> to vector<8x32xf32>
    %344 = arith.mulf %341, %327 : vector<8x32xf32>
    %345 = arith.mulf %340, %342 : vector<8x32xf32>
    %346 = arith.addf %344, %345 : vector<8x32xf32>
    %347 = math.tanh %346 : vector<8x32xf32>
    %348 = arith.mulf %343, %347 : vector<8x32xf32>
    %cst_70 = arith.constant 0.000000e+00 : f32
    %349 = vector.broadcast %cst_70 : f32 to vector<8x32xf32>
    %350 = arith.maximumf %348, %349 : vector<8x32xf32>
    %c0_71 = arith.constant 0 : index
    %c0_72 = arith.constant 0 : index
    %351 = vector.load %arg7[%c0_71, %c0_72] : memref<32x128xf32, #tpu.memory_space<vmem>>, vector<32x128xf32>
    %cst_73 = arith.constant dense<0.000000e+00> : vector<8x128xf32>
    %352 = tpu.matmul %350, %351, %cst_73 {dimension_numbers = #tpu.dot_dimension_numbers<[1], [0], [0], [1], [0, 0, 1, 1], [], []>} : vector<8x32xf32>, vector<32x128xf32>, vector<8x128xf32> -> vector<8x128xf32>
    %c0_74 = arith.constant 0 : index
    %c0_75 = arith.constant 0 : index
    %353 = vector.load %arg8[%c0_74, %c0_75] : memref<1x128xf32, #tpu.memory_space<vmem>>, vector<1x128xf32>
    %354 = vector.broadcast %353 : vector<1x128xf32> to vector<8x128xf32>
    %355 = arith.addf %352, %354 : vector<8x128xf32>
    %cst_76 = arith.constant 0.000000e+00 : f32
    %356 = vector.broadcast %cst_76 : f32 to vector<8x128xf32>
    %357 = arith.maximumf %355, %356 : vector<8x128xf32>
    %c0_77 = arith.constant 0 : index
    %c0_78 = arith.constant 0 : index
    %358 = vector.load %arg9[%c0_77, %c0_78] : memref<128x128xf32, #tpu.memory_space<vmem>>, vector<128x128xf32>
    %cst_79 = arith.constant dense<0.000000e+00> : vector<8x128xf32>
    %359 = tpu.matmul %357, %358, %cst_79 {dimension_numbers = #tpu.dot_dimension_numbers<[1], [0], [0], [1], [0, 0, 1, 1], [], []>} : vector<8x128xf32>, vector<128x128xf32>, vector<8x128xf32> -> vector<8x128xf32>
    %c0_80 = arith.constant 0 : index
    %c0_81 = arith.constant 0 : index
    %360 = vector.load %arg10[%c0_80, %c0_81] : memref<1x128xf32, #tpu.memory_space<vmem>>, vector<1x128xf32>
    %361 = vector.broadcast %360 : vector<1x128xf32> to vector<8x128xf32>
    %362 = arith.addf %359, %361 : vector<8x128xf32>
    %cst_82 = arith.constant 0.000000e+00 : f32
    %363 = vector.broadcast %cst_82 : f32 to vector<8x128xf32>
    %364 = arith.maximumf %362, %363 : vector<8x128xf32>
    %c0_83 = arith.constant 0 : index
    %c0_84 = arith.constant 0 : index
    %365 = vector.load %arg11[%c0_83, %c0_84] : memref<128x128xf32, #tpu.memory_space<vmem>>, vector<128x128xf32>
    %cst_85 = arith.constant dense<0.000000e+00> : vector<8x128xf32>
    %366 = tpu.matmul %364, %365, %cst_85 {dimension_numbers = #tpu.dot_dimension_numbers<[1], [0], [0], [1], [0, 0, 1, 1], [], []>} : vector<8x128xf32>, vector<128x128xf32>, vector<8x128xf32> -> vector<8x128xf32>
    %c0_86 = arith.constant 0 : index
    %c0_87 = arith.constant 0 : index
    %367 = vector.load %arg12[%c0_86, %c0_87] : memref<1x128xf32, #tpu.memory_space<vmem>>, vector<1x128xf32>
    %368 = vector.broadcast %367 : vector<1x128xf32> to vector<8x128xf32>
    %369 = arith.addf %366, %368 : vector<8x128xf32>
    %cst_88 = arith.constant 0.000000e+00 : f32
    %370 = vector.broadcast %cst_88 : f32 to vector<8x128xf32>
    %371 = arith.maximumf %369, %370 : vector<8x128xf32>
    %c0_89 = arith.constant 0 : index
    %c0_90 = arith.constant 0 : index
    %372 = vector.load %arg13[%c0_89, %c0_90] : memref<128x128xf32, #tpu.memory_space<vmem>>, vector<128x128xf32>
    %cst_91 = arith.constant dense<0.000000e+00> : vector<8x128xf32>
    %373 = tpu.matmul %371, %372, %cst_91 {dimension_numbers = #tpu.dot_dimension_numbers<[1], [0], [0], [1], [0, 0, 1, 1], [], []>} : vector<8x128xf32>, vector<128x128xf32>, vector<8x128xf32> -> vector<8x128xf32>
    %c0_92 = arith.constant 0 : index
    %c0_93 = arith.constant 0 : index
    %374 = vector.load %arg14[%c0_92, %c0_93] : memref<1x128xf32, #tpu.memory_space<vmem>>, vector<1x128xf32>
    %375 = vector.broadcast %374 : vector<1x128xf32> to vector<8x128xf32>
    %376 = arith.addf %373, %375 : vector<8x128xf32>
    %c0_94 = arith.constant 0 : index
    %c0_95 = arith.constant 0 : index
    %377 = vector.load %arg15[%c0_94, %c0_95] : memref<8x128xf32, #tpu.memory_space<vmem>>, vector<8x128xf32>
    tpu.vector_store %arg15[%c0_94, %c0_95], %376 {strides = array<i32>} : memref<8x128xf32, #tpu.memory_space<vmem>>, vector<8x128xf32>,
    return
  }
}

</mosaic_0001>

<llo_original>
// kernel: lstm_model_forward.1
$region0: #{lstm_model_forward.1}
  #allocation0 [shape = 'u32[]', space=smem, size = 0x4, offset = 0x4, fixed_abs, tag = 'smem constant byte address 0x4 - core index']
  #allocation1 [shape = 'u32[144,128]{1,0:T(1,128)}', space=vmem, size = 0x12000, scoped, tag = 'internal scratch']
  #allocation2 [shape = 'f32[8,8,32]{2,1,0:T(8,128)}', space=vmem, size = 0x8000, scoped, tag = 'scratch operand']
  %s0 = inlined_call_operand.vmem [shape: f32[64,16], index: 0, kind: input, shape index: {}]
  %s1 = inlined_call_operand.vmem [shape: f32[16,128], index: 1, kind: input, shape index: {}]
  %s2 = inlined_call_operand.vmem [shape: f32[32,128], index: 2, kind: input, shape index: {}]
  %s3 = inlined_call_operand.vmem [shape: f32[1,128], index: 3, kind: input, shape index: {}]
  %s4 = inlined_call_operand.vmem [shape: f32[32,128], index: 4, kind: input, shape index: {}]
  %s5 = inlined_call_operand.vmem [shape: f32[32,128], index: 5, kind: input, shape index: {}]
  %s6 = inlined_call_operand.vmem [shape: f32[1,128], index: 6, kind: input, shape index: {}]
  %s7 = inlined_call_operand.vmem [shape: f32[32,128], index: 7, kind: input, shape index: {}]
  %s8 = inlined_call_operand.vmem [shape: f32[1,128], index: 8, kind: input, shape index: {}]
  %s9 = inlined_call_operand.vmem [shape: f32[128,128], index: 9, kind: input, shape index: {}]
  %s10 = inlined_call_operand.vmem [shape: f32[1,128], index: 10, kind: input, shape index: {}]
  %s11 = inlined_call_operand.vmem [shape: f32[128,128], index: 11, kind: input, shape index: {}]
  %s12 = inlined_call_operand.vmem [shape: f32[1,128], index: 12, kind: input, shape index: {}]
  %s13 = inlined_call_operand.vmem [shape: f32[128,128], index: 13, kind: input, shape index: {}]
  %s14 = inlined_call_operand.vmem [shape: f32[1,128], index: 14, kind: input, shape index: {}]
  %s15 = inlined_call_operand.vmem [shape: f32[8,128], index: 15, kind: output, shape index: {}]
  %s16 = sld [smem:[#allocation0]]
  $region70: #{lstm_model_forward.1} parent=0
    _
  %s18 = ssub.s32 1, %s16
  %s19 = scalar_select 0, %s18, %s16
  // Predicated region
  $region2: #{lstm_model_forward.1} parent=0 // pred_check
    _
  $region3: #{lstm_model_forward.1} parent=0 // pred_check_branch
    %21 = sbr.rel (0) target = $region5
  $region4: #{lstm_model_forward.1} parent=0 // pred_region
    _
  $region5: #{lstm_model_forward.1} parent=0 // pred_fallthru
    _
  // Predicated region
  $region6: #{lstm_model_forward.1} parent=0 // pred_check
    _
  $region7: #{lstm_model_forward.1} parent=0 // pred_check_branch
    %23 = sbr.rel (0) target = $region9
  $region8: #{lstm_model_forward.1} parent=0 // pred_region
    _
  $region9: #{lstm_model_forward.1} parent=0 // pred_fallthru
    _
  // Predicated region
  $region10: #{lstm_model_forward.1} parent=0 // pred_check
    _
  $region11: #{lstm_model_forward.1} parent=0 // pred_check_branch
    %25 = sbr.rel (0) target = $region13
  $region12: #{lstm_model_forward.1} parent=0 // pred_region
    _
  $region13: #{lstm_model_forward.1} parent=0 // pred_fallthru
    _
  // Predicated region
  $region14: #{lstm_model_forward.1} parent=0 // pred_check
    _
  $region15: #{lstm_model_forward.1} parent=0 // pred_check_branch
    %27 = sbr.rel (0) target = $region17
  $region16: #{lstm_model_forward.1} parent=0 // pred_region
    _
  $region17: #{lstm_model_forward.1} parent=0 // pred_fallthru
    _
  // Predicated region
  $region18: #{lstm_model_forward.1} parent=0 // pred_check
    _
  $region19: #{lstm_model_forward.1} parent=0 // pred_check_branch
    %29 = sbr.rel (0) target = $region21
  $region20: #{lstm_model_forward.1} parent=0 // pred_region
    _
  $region21: #{lstm_model_forward.1} parent=0 // pred_fallthru
    _
  // Predicated region
  $region22: #{lstm_model_forward.1} parent=0 // pred_check
    _
  $region23: #{lstm_model_forward.1} parent=0 // pred_check_branch
    %31 = sbr.rel (0) target = $region25
  $region24: #{lstm_model_forward.1} parent=0 // pred_region
    _
  $region25: #{lstm_model_forward.1} parent=0 // pred_fallthru
    _
  // Predicated region
  $region26: #{lstm_model_forward.1} parent=0 // pred_check
    _
  $region27: #{lstm_model_forward.1} parent=0 // pred_check_branch
    %33 = sbr.rel (0) target = $region29
  $region28: #{lstm_model_forward.1} parent=0 // pred_region
    _
  $region29: #{lstm_model_forward.1} parent=0 // pred_fallthru
    _
  // Predicated region
  $region30: #{lstm_model_forward.1} parent=0 // pred_check
    _
  $region31: #{lstm_model_forward.1} parent=0 // pred_check_branch
    %35 = sbr.rel (0) target = $region33
  $region32: #{lstm_model_forward.1} parent=0 // pred_region
    _
  $region33: #{lstm_model_forward.1} parent=0 // pred_fallthru
    _
  // Predicated region
  $region34: #{lstm_model_forward.1} parent=0 // pred_check
    _
  $region35: #{lstm_model_forward.1} parent=0 // pred_check_branch
    %37 = sbr.rel (0) target = $region37
  $region36: #{lstm_model_forward.1} parent=0 // pred_region
    _
  $region37: #{lstm_model_forward.1} parent=0 // pred_fallthru
    _
  // Predicated region
  $region38: #{lstm_model_forward.1} parent=0 // pred_check
    _
  $region39: #{lstm_model_forward.1} parent=0 // pred_check_branch
    %39 = sbr.rel (0) target = $region41
  $region40: #{lstm_model_forward.1} parent=0 // pred_region
    _
  $region41: #{lstm_model_forward.1} parent=0 // pred_fallthru
    _
  // Predicated region
  $region42: #{lstm_model_forward.1} parent=0 // pred_check
    _
  $region43: #{lstm_model_forward.1} parent=0 // pred_check_branch
    %41 = sbr.rel (0) target = $region45
  $region44: #{lstm_model_forward.1} parent=0 // pred_region
    _
  $region45: #{lstm_model_forward.1} parent=0 // pred_fallthru
    _
  // Predicated region
  $region46: #{lstm_model_forward.1} parent=0 // pred_check
    _
  $region47: #{lstm_model_forward.1} parent=0 // pred_check_branch
    %43 = sbr.rel (0) target = $region49
  $region48: #{lstm_model_forward.1} parent=0 // pred_region
    _
  $region49: #{lstm_model_forward.1} parent=0 // pred_fallthru
    _
  // Predicated region
  $region50: #{lstm_model_forward.1} parent=0 // pred_check
    _
  $region51: #{lstm_model_forward.1} parent=0 // pred_check_branch
    %45 = sbr.rel (0) target = $region53
  $region52: #{lstm_model_forward.1} parent=0 // pred_region
    _
  $region53: #{lstm_model_forward.1} parent=0 // pred_fallthru
    _
  // Predicated region
  $region54: #{lstm_model_forward.1} parent=0 // pred_check
    _
  $region55: #{lstm_model_forward.1} parent=0 // pred_check_branch
    %47 = sbr.rel (0) target = $region57
  $region56: #{lstm_model_forward.1} parent=0 // pred_region
    _
  $region57: #{lstm_model_forward.1} parent=0 // pred_fallthru
    _
  // Predicated region
  $region58: #{lstm_model_forward.1} parent=0 // pred_check
    _
  $region59: #{lstm_model_forward.1} parent=0 // pred_check_branch
    %49 = sbr.rel (0) target = $region61
  $region60: #{lstm_model_forward.1} parent=0 // pred_region
    _
  $region61: #{lstm_model_forward.1} parent=0 // pred_fallthru
    _
  %v50 = vld [vmem:[%s0] sm:$0xff]
  %v51 = vld [vmem:[%s0 + $0x8] sm:$0xff]
  %v52 = vld [vmem:[%s0 + $0x10] sm:$0xff]
  %v53 = vld [vmem:[%s0 + $0x18] sm:$0xff]
  %v54 = vld [vmem:[%s0 + $0x20] sm:$0xff]
  %v55 = vld [vmem:[%s0 + $0x28] sm:$0xff]
  %v56 = vld [vmem:[%s0 + $0x30] sm:$0xff]
  %v57 = vld [vmem:[%s0 + $0x38] sm:$0xff]
  %v58 = vld [vmem:[%s2] sm:$0xff]
  %v59 = vld [vmem:[%s2 + $0x8] sm:$0xff]
  %v60 = vld [vmem:[%s2 + $0x10] sm:$0xff]
  %v61 = vld [vmem:[%s2 + $0x18] sm:$0xff]
  %v62 = vld [vmem:[%s3] sm:$0x1]
  %v63 = vld [vmem:[%s1] sm:$0xff]
  %v64 = vld [vmem:[%s1 + $0x8] sm:$0xff]
  %v66 = vlaneseq
  %v67 = vshrl.u32 %v66, 7
  %v68 = vsub.s32 0, %v67
  %v69 = vrot.slane %v62, %v68
  %vm71 = vcmask 130048
  %v73 = vsel %vm71, %v50, 0
  %v76 = vsel %vm71, %v51, 0
  %v79 = vsel %vm71, %v52, 0
  %v82 = vsel %vm71, %v53, 0
  %v85 = vsel %vm71, %v54, 0
  %v88 = vsel %vm71, %v55, 0
  %v91 = vsel %vm71, %v56, 0
  %v94 = vsel %vm71, %v57, 0
  %96 = vmatprep.subr.mxu0 0.0
  %97 = vmatpush1.msra.mxu0 %v63
  %98 = vmatprep.subr.mxu0 0.0
  %99 = vmatpush1.msra.mxu0 %v64
  %100 = vmatprep.subr.mxu0 0.0
  %101 = vmatpush1.msra.mxu0 0.0
  %102 = vmatprep.subr.mxu0 0.0
  %103 = vmatpush1.msra.mxu0 0.0
  %104 = vmatprep.subr.mxu0 0.0
  %105 = vmatpush1.msra.mxu0 0.0
  %106 = vmatprep.subr.mxu0 0.0
  %107 = vmatpush1.msra.mxu0 0.0
  %108 = vmatprep.subr.mxu0 0.0
  %109 = vmatpush1.msra.mxu0 0.0
  %110 = vmatprep.subr.mxu0 0.0
  %111 = vmatpush1.msra.mxu0 0.0
  %112 = vmatprep.subr.mxu0 0.0
  %113 = vmatpush1.msra.mxu0 0.0
  %114 = vmatprep.subr.mxu0 0.0
  %115 = vmatpush1.msra.mxu0 0.0
  %116 = vmatprep.subr.mxu0 0.0
  %117 = vmatpush1.msra.mxu0 0.0
  %118 = vmatprep.subr.mxu0 0.0
  %119 = vmatpush1.msra.mxu0 0.0
  %120 = vmatprep.subr.mxu0 0.0
  %121 = vmatpush1.msra.mxu0 0.0
  %122 = vmatprep.subr.mxu0 0.0
  %123 = vmatpush1.msra.mxu0 0.0
  %124 = vmatprep.subr.mxu0 0.0
  %125 = vmatpush1.msra.mxu0 0.0
  %126 = vmatprep.subr.mxu0 0.0
  %127 = vmatpush1.msra.mxu0 0.0
  %128 = vmatprep.subr.mxu0 0.0
  %129 = vmatpush1.msra.mxu0 0.0
  %130 = vmatprep.subr.mxu0 0.0
  %131 = vmatpush1.msra.mxu0 0.0
  %132 = vmatprep.subr.mxu0 0.0
  %133 = vmatpush1.msra.mxu0 0.0
  %134 = vmatprep.subr.mxu0 0.0
  %135 = vmatpush1.msra.mxu0 0.0
  %136 = vmatprep.subr.mxu0 0.0
  %137 = vmatpush1.msra.mxu0 0.0
  %138 = vmatprep.subr.mxu0 0.0
  %139 = vmatpush1.msra.mxu0 0.0
  %140 = vmatprep.subr.mxu0 0.0
  %141 = vmatpush1.msra.mxu0 0.0
  %142 = vmatprep.subr.mxu0 0.0
  %143 = vmatpush1.msra.mxu0 0.0
  %144 = vmatprep.subr.mxu0 0.0
  %145 = vmatpush1.msra.mxu0 0.0
  %146 = vmatprep.subr.mxu0 0.0
  %147 = vmatpush1.msra.mxu0 0.0
  %148 = vmatprep.subr.mxu0 0.0
  %149 = vmatpush1.msra.mxu0 0.0
  %150 = vmatprep.subr.mxu0 0.0
  %151 = vmatpush1.msra.mxu0 0.0
  %152 = vmatprep.subr.mxu0 0.0
  %153 = vmatpush1.msra.mxu0 0.0
  %154 = vmatprep.subr.mxu0 0.0
  %155 = vmatpush1.msra.mxu0 0.0
  %156 = vmatprep.subr.mxu0 0.0
  %157 = vmatpush1.msra.mxu0 0.0
  %158 = vmatprep.subr.mxu0 0.0
  %159 = vmatpush1.msra.mxu0 0.0
  %160 = vmatprep.mubr.f32.mxu0 0.0
  %161 = vmatmul.mubr.f32.gmra.mrb[0].mxu0 %v73
  %v162 = vpop.f32.mrb[0].mxu0
  %v163 = vadd.f32 %v69, %v162
  %v164 = vpop.f32.mrb[0].mxu0
  %165 = vmatprep.mubr.f32.mxu0 0.0
  %166 = vmatmul.mubr.f32.gmra.mrb[0].mxu0 %v76
  %v167 = vpop.f32.mrb[0].mxu0
  %v168 = vadd.f32 %v69, %v167
  %v169 = vpop.f32.mrb[0].mxu0
  %170 = vmatprep.mubr.f32.mxu0 0.0
  %171 = vmatmul.mubr.f32.gmra.mrb[0].mxu0 %v79
  %v172 = vpop.f32.mrb[0].mxu0
  %v173 = vadd.f32 %v69, %v172
  %v174 = vpop.f32.mrb[0].mxu0
  %175 = vmatprep.mubr.f32.mxu0 0.0
  %176 = vmatmul.mubr.f32.gmra.mrb[0].mxu0 %v82
  %v177 = vpop.f32.mrb[0].mxu0
  %v178 = vadd.f32 %v69, %v177
  %v179 = vpop.f32.mrb[0].mxu0
  %180 = vmatprep.mubr.f32.mxu0 0.0
  %181 = vmatmul.mubr.f32.gmra.mrb[0].mxu0 %v85
  %v182 = vpop.f32.mrb[0].mxu0
  %v183 = vadd.f32 %v69, %v182
  %v184 = vpop.f32.mrb[0].mxu0
  %185 = vmatprep.mubr.f32.mxu0 0.0
  %186 = vmatmul.mubr.f32.gmra.mrb[0].mxu0 %v88
  %v187 = vpop.f32.mrb[0].mxu0
  %v188 = vadd.f32 %v69, %v187
  %v189 = vpop.f32.mrb[0].mxu0
  %190 = vmatprep.mubr.f32.mxu0 0.0
  %191 = vmatmul.mubr.f32.gmra.mrb[0].mxu0 %v91
  %v192 = vpop.f32.mrb[0].mxu0
  %v193 = vadd.f32 %v69, %v192
  %v194 = vpop.f32.mrb[0].mxu0
  %195 = vmatprep.mubr.f32.mxu0 0.0
  %196 = vmatmul.mubr.f32.gmra.mrb[0].mxu0 %v94
  %v197 = vpop.f32.mrb[0].mxu0
  %v198 = vadd.f32 %v69, %v197
  %v199 = vpop.f32.mrb[0].mxu0
  %200 = vdwg.mxu0
  %vm201 = vcmask 261120
  %v203 = vsel %vm201, 0.0, 0
  %205 = vmatprep.subr.mxu0 0.0
  %206 = vmatpush1.msra.mxu0 %v58
  %207 = vmatprep.subr.mxu0 0.0
  %208 = vmatpush1.msra.mxu0 %v59
  %209 = vmatprep.subr.mxu0 0.0
  %210 = vmatpush1.msra.mxu0 %v60
  %211 = vmatprep.subr.mxu0 0.0
  %212 = vmatpush1.msra.mxu0 %v61
  %213 = vmatprep.subr.mxu0 0.0
  %214 = vmatpush1.msra.mxu0 0.0
  %215 = vmatprep.subr.mxu0 0.0
  %216 = vmatpush1.msra.mxu0 0.0
  %217 = vmatprep.subr.mxu0 0.0
  %218 = vmatpush1.msra.mxu0 0.0
  %219 = vmatprep.subr.mxu0 0.0
  %220 = vmatpush1.msra.mxu0 0.0
  %221 = vmatprep.subr.mxu0 0.0
  %222 = vmatpush1.msra.mxu0 0.0
  %223 = vmatprep.subr.mxu0 0.0
  %224 = vmatpush1.msra.mxu0 0.0
  %225 = vmatprep.subr.mxu0 0.0
  %226 = vmatpush1.msra.mxu0 0.0
  %227 = vmatprep.subr.mxu0 0.0
  %228 = vmatpush1.msra.mxu0 0.0
  %229 = vmatprep.subr.mxu0 0.0
  %230 = vmatpush1.msra.mxu0 0.0
  %231 = vmatprep.subr.mxu0 0.0
  %232 = vmatpush1.msra.mxu0 0.0
  %233 = vmatprep.subr.mxu0 0.0
  %234 = vmatpush1.msra.mxu0 0.0
  %235 = vmatprep.subr.mxu0 0.0
  %236 = vmatpush1.msra.mxu0 0.0
  %237 = vmatprep.subr.mxu0 0.0
  %238 = vmatpush1.msra.mxu0 0.0
  %239 = vmatprep.subr.mxu0 0.0
  %240 = vmatpush1.msra.mxu0 0.0
  %241 = vmatprep.subr.mxu0 0.0
  %242 = vmatpush1.msra.mxu0 0.0
  %243 = vmatprep.subr.mxu0 0.0
  %244 = vmatpush1.msra.mxu0 0.0
  %245 = vmatprep.subr.mxu0 0.0
  %246 = vmatpush1.msra.mxu0 0.0
  %247 = vmatprep.subr.mxu0 0.0
  %248 = vmatpush1.msra.mxu0 0.0
  %249 = vmatprep.subr.mxu0 0.0
  %250 = vmatpush1.msra.mxu0 0.0
  %251 = vmatprep.subr.mxu0 0.0
  %252 = vmatpush1.msra.mxu0 0.0
  %253 = vmatprep.subr.mxu0 0.0
  %254 = vmatpush1.msra.mxu0 0.0
  %255 = vmatprep.subr.mxu0 0.0
  %256 = vmatpush1.msra.mxu0 0.0
  %257 = vmatprep.subr.mxu0 0.0
  %258 = vmatpush1.msra.mxu0 0.0
  %259 = vmatprep.subr.mxu0 0.0
  %260 = vmatpush1.msra.mxu0 0.0
  %261 = vmatprep.subr.mxu0 0.0
  %262 = vmatpush1.msra.mxu0 0.0
  %263 = vmatprep.subr.mxu0 0.0
  %264 = vmatpush1.msra.mxu0 0.0
  %265 = vmatprep.subr.mxu0 0.0
  %266 = vmatpush1.msra.mxu0 0.0
  %267 = vmatprep.subr.mxu0 0.0
  %268 = vmatpush1.msra.mxu0 0.0
  %269 = vmatprep.mubr.f32.mxu0 0.0
  %270 = vmatmul.mubr.f32.gmra.mrb[0].mxu0 %v203
  %v271 = vpop.f32.mrb[0].mxu0
  %v272 = vadd.f32 0.0, %v271
  %v273 = vpop.f32.mrb[0].mxu0
  %274 = vdwg.mxu0
  %v275 = vadd.f32 %v163, %v272
  %v276 = vxor.u32 %v275, 2147483648
  %v277 = vmul.f32 %v276, 1.442695
  %v278 = vpow.pop %v277
  %v279 = vadd.f32 %v278, 1.0
  %v280 = vrcp.pop %v279
  %v281 = vmul.f32 1.0, %v280
  %v282 = vtanh.pop %v275
  %v283 = vmul.f32 %v281, 0.0
  %285 = vrot.lane.b32.xlu0 %v282, 64
  %v286 = vpop.permute.xlu0 %285
  %v288 = vmul.f32 %v281, %v286
  %290 = vrot.lane.b32.xlu0 %v288, 32
  %v291 = vpop.permute.xlu0 %290
  %v293 = vadd.f32 %v283, %v291
  %v294 = vtanh.pop %v293
  %296 = vrot.lane.b32.xlu0 %v294, 64
  %v297 = vpop.permute.xlu0 %296
  %v299 = vmul.f32 %v281, %v297
  %301 = vrot.lane.b32.xlu0 %v299, 32
  %v302 = vpop.permute.xlu0 %301
  %304 = vst.msk [vmem:[#allocation2] sm:$0xff] %vm201, %v302
  %v305 = vsel %vm201, %v302, 0
  %307 = vmatprep.subr.mxu0 0.0
  %308 = vmatpush1.msra.mxu0 %v58
  %309 = vmatprep.subr.mxu0 0.0
  %310 = vmatpush1.msra.mxu0 %v59
  %311 = vmatprep.subr.mxu0 0.0
  %312 = vmatpush1.msra.mxu0 %v60
  %313 = vmatprep.subr.mxu0 0.0
  %314 = vmatpush1.msra.mxu0 %v61
  %315 = vmatprep.subr.mxu0 0.0
  %316 = vmatpush1.msra.mxu0 0.0
  %317 = vmatprep.subr.mxu0 0.0
  %318 = vmatpush1.msra.mxu0 0.0
  %319 = vmatprep.subr.mxu0 0.0
  %320 = vmatpush1.msra.mxu0 0.0
  %321 = vmatprep.subr.mxu0 0.0
  %322 = vmatpush1.msra.mxu0 0.0
  %323 = vmatprep.subr.mxu0 0.0
  %324 = vmatpush1.msra.mxu0 0.0
  %325 = vmatprep.subr.mxu0 0.0
  %326 = vmatpush1.msra.mxu0 0.0
  %327 = vmatprep.subr.mxu0 0.0
  %328 = vmatpush1.msra.mxu0 0.0
  %329 = vmatprep.subr.mxu0 0.0
  %330 = vmatpush1.msra.mxu0 0.0
  %331 = vmatprep.subr.mxu0 0.0
  %332 = vmatpush1.msra.mxu0 0.0
  %333 = vmatprep.subr.mxu0 0.0
  %334 = vmatpush1.msra.mxu0 0.0
  %335 = vmatprep.subr.mxu0 0.0
  %336 = vmatpush1.msra.mxu0 0.0
  %337 = vmatprep.subr.mxu0 0.0
  %338 = vmatpush1.msra.mxu0 0.0
  %339 = vmatprep.subr.mxu0 0.0
  %340 = vmatpush1.msra.mxu0 0.0
  %341 = vmatprep.subr.mxu0 0.0
  %342 = vmatpush1.msra.mxu0 0.0
  %343 = vmatprep.subr.mxu0 0.0
  %344 = vmatpush1.msra.mxu0 0.0
  %345 = vmatprep.subr.mxu0 0.0
  %346 = vmatpush1.msra.mxu0 0.0
  %347 = vmatprep.subr.mxu0 0.0
  %348 = vmatpush1.msra.mxu0 0.0
  %349 = vmatprep.subr.mxu0 0.0
  %350 = vmatpush1.msra.mxu0 0.0
  %351 = vmatprep.subr.mxu0 0.0
  %352 = vmatpush1.msra.mxu0 0.0
  %353 = vmatprep.subr.mxu0 0.0
  %354 = vmatpush1.msra.mxu0 0.0
  %355 = vmatprep.subr.mxu0 0.0
  %356 = vmatpush1.msra.mxu0 0.0
  %357 = vmatprep.subr.mxu0 0.0
  %358 = vmatpush1.msra.mxu0 0.0
  %359 = vmatprep.subr.mxu0 0.0
  %360 = vmatpush1.msra.mxu0 0.0
  %361 = vmatprep.subr.mxu0 0.0
  %362 = vmatpush1.msra.mxu0 0.0
  %363 = vmatprep.subr.mxu0 0.0
  %364 = vmatpush1.msra.mxu0 0.0
  %365 = vmatprep.subr.mxu0 0.0
  %366 = vmatpush1.msra.mxu0 0.0
  %367 = vmatprep.subr.mxu0 0.0
  %368 = vmatpush1.msra.mxu0 0.0
  %369 = vmatprep.subr.mxu0 0.0
  %370 = vmatpush1.msra.mxu0 0.0
  %371 = vmatprep.mubr.f32.mxu0 0.0
  %372 = vmatmul.mubr.f32.gmra.mrb[0].mxu0 %v305
  %v373 = vpop.f32.mrb[0].mxu0
  %v374 = vadd.f32 0.0, %v373
  %v375 = vpop.f32.mrb[0].mxu0
  %376 = vdwg.mxu0
  %v377 = vadd.f32 %v168, %v374
  %v378 = vxor.u32 %v377, 2147483648
  %v379 = vmul.f32 %v378, 1.442695
  %v380 = vpow.pop %v379
  %v381 = vadd.f32 %v380, 1.0
  %v382 = vrcp.pop %v381
  %v383 = vmul.f32 1.0, %v382
  %v384 = vtanh.pop %v377
  %v385 = vmul.f32 %v383, %v293
  %387 = vrot.lane.b32.xlu0 %v384, 64
  %v388 = vpop.permute.xlu0 %387
  %v390 = vmul.f32 %v383, %v388
  %392 = vrot.lane.b32.xlu0 %v390, 32
  %v393 = vpop.permute.xlu0 %392
  %v395 = vadd.f32 %v385, %v393
  %v396 = vtanh.pop %v395
  %398 = vrot.lane.b32.xlu0 %v396, 64
  %v399 = vpop.permute.xlu0 %398
  %v401 = vmul.f32 %v383, %v399
  %403 = vrot.lane.b32.xlu0 %v401, 32
  %v404 = vpop.permute.xlu0 %403
  %s406 = scalar_lea.vmem [#allocation2], 8
  %407 = vst.msk [vmem:[%s406] sm:$0xff] %vm201, %v404
  %v408 = vsel %vm201, %v404, 0
  %410 = vmatprep.subr.mxu0 0.0
  %411 = vmatpush1.msra.mxu0 %v58
  %412 = vmatprep.subr.mxu0 0.0
  %413 = vmatpush1.msra.mxu0 %v59
  %414 = vmatprep.subr.mxu0 0.0
  %415 = vmatpush1.msra.mxu0 %v60
  %416 = vmatprep.subr.mxu0 0.0
  %417 = vmatpush1.msra.mxu0 %v61
  %418 = vmatprep.subr.mxu0 0.0
  %419 = vmatpush1.msra.mxu0 0.0
  %420 = vmatprep.subr.mxu0 0.0
  %421 = vmatpush1.msra.mxu0 0.0
  %422 = vmatprep.subr.mxu0 0.0
  %423 = vmatpush1.msra.mxu0 0.0
  %424 = vmatprep.subr.mxu0 0.0
  %425 = vmatpush1.msra.mxu0 0.0
  %426 = vmatprep.subr.mxu0 0.0
  %427 = vmatpush1.msra.mxu0 0.0
  %428 = vmatprep.subr.mxu0 0.0
  %429 = vmatpush1.msra.mxu0 0.0
  %430 = vmatprep.subr.mxu0 0.0
  %431 = vmatpush1.msra.mxu0 0.0
  %432 = vmatprep.subr.mxu0 0.0
  %433 = vmatpush1.msra.mxu0 0.0
  %434 = vmatprep.subr.mxu0 0.0
  %435 = vmatpush1.msra.mxu0 0.0
  %436 = vmatprep.subr.mxu0 0.0
  %437 = vmatpush1.msra.mxu0 0.0
  %438 = vmatprep.subr.mxu0 0.0
  %439 = vmatpush1.msra.mxu0 0.0
  %440 = vmatprep.subr.mxu0 0.0
  %441 = vmatpush1.msra.mxu0 0.0
  %442 = vmatprep.subr.mxu0 0.0
  %443 = vmatpush1.msra.mxu0 0.0
  %444 = vmatprep.subr.mxu0 0.0
  %445 = vmatpush1.msra.mxu0 0.0
  %446 = vmatprep.subr.mxu0 0.0
  %447 = vmatpush1.msra.mxu0 0.0
  %448 = vmatprep.subr.mxu0 0.0
  %449 = vmatpush1.msra.mxu0 0.0
  %450 = vmatprep.subr.mxu0 0.0
  %451 = vmatpush1.msra.mxu0 0.0
  %452 = vmatprep.subr.mxu0 0.0
  %453 = vmatpush1.msra.mxu0 0.0
  %454 = vmatprep.subr.mxu0 0.0
  %455 = vmatpush1.msra.mxu0 0.0
  %456 = vmatprep.subr.mxu0 0.0
  %457 = vmatpush1.msra.mxu0 0.0
  %458 = vmatprep.subr.mxu0 0.0
  %459 = vmatpush1.msra.mxu0 0.0
  %460 = vmatprep.subr.mxu0 0.0
  %461 = vmatpush1.msra.mxu0 0.0
  %462 = vmatprep.subr.mxu0 0.0
  %463 = vmatpush1.msra.mxu0 0.0
  %464 = vmatprep.subr.mxu0 0.0
  %465 = vmatpush1.msra.mxu0 0.0
  %466 = vmatprep.subr.mxu0 0.0
  %467 = vmatpush1.msra.mxu0 0.0
  %468 = vmatprep.subr.mxu0 0.0
  %469 = vmatpush1.msra.mxu0 0.0
  %470 = vmatprep.subr.mxu0 0.0
  %471 = vmatpush1.msra.mxu0 0.0
  %472 = vmatprep.subr.mxu0 0.0
  %473 = vmatpush1.msra.mxu0 0.0
  %474 = vmatprep.mubr.f32.mxu0 0.0
  %475 = vmatmul.mubr.f32.gmra.mrb[0].mxu0 %v408
  %v476 = vpop.f32.mrb[0].mxu0
  %v477 = vadd.f32 0.0, %v476
  %v478 = vpop.f32.mrb[0].mxu0
  %479 = vdwg.mxu0
  %v480 = vadd.f32 %v173, %v477
  %v481 = vxor.u32 %v480, 2147483648
  %v482 = vmul.f32 %v481, 1.442695
  %v483 = vpow.pop %v482
  %v484 = vadd.f32 %v483, 1.0
  %v485 = vrcp.pop %v484
  %v486 = vmul.f32 1.0, %v485
  %v487 = vtanh.pop %v480
  %v488 = vmul.f32 %v486, %v395
  %490 = vrot.lane.b32.xlu0 %v487, 64
  %v491 = vpop.permute.xlu0 %490
  %v493 = vmul.f32 %v486, %v491
  %495 = vrot.lane.b32.xlu0 %v493, 32
  %v496 = vpop.permute.xlu0 %495
  %v498 = vadd.f32 %v488, %v496
  %v499 = vtanh.pop %v498
  %501 = vrot.lane.b32.xlu0 %v499, 64
  %v502 = vpop.permute.xlu0 %501
  %v504 = vmul.f32 %v486, %v502
  %506 = vrot.lane.b32.xlu0 %v504, 32
  %v507 = vpop.permute.xlu0 %506
  %s509 = scalar_lea.vmem [#allocation2], 16
  %510 = vst.msk [vmem:[%s509] sm:$0xff] %vm201, %v507
  %v511 = vsel %vm201, %v507, 0
  %513 = vmatprep.subr.mxu0 0.0
  %514 = vmatpush1.msra.mxu0 %v58
  %515 = vmatprep.subr.mxu0 0.0
  %516 = vmatpush1.msra.mxu0 %v59
  %517 = vmatprep.subr.mxu0 0.0
  %518 = vmatpush1.msra.mxu0 %v60
  %519 = vmatprep.subr.mxu0 0.0
  %520 = vmatpush1.msra.mxu0 %v61
  %521 = vmatprep.subr.mxu0 0.0
  %522 = vmatpush1.msra.mxu0 0.0
  %523 = vmatprep.subr.mxu0 0.0
  %524 = vmatpush1.msra.mxu0 0.0
  %525 = vmatprep.subr.mxu0 0.0
  %526 = vmatpush1.msra.mxu0 0.0
  %527 = vmatprep.subr.mxu0 0.0
  %528 = vmatpush1.msra.mxu0 0.0
  %529 = vmatprep.subr.mxu0 0.0
  %530 = vmatpush1.msra.mxu0 0.0
  %531 = vmatprep.subr.mxu0 0.0
  %532 = vmatpush1.msra.mxu0 0.0
  %533 = vmatprep.subr.mxu0 0.0
  %534 = vmatpush1.msra.mxu0 0.0
  %535 = vmatprep.subr.mxu0 0.0
  %536 = vmatpush1.msra.mxu0 0.0
  %537 = vmatprep.subr.mxu0 0.0
  %538 = vmatpush1.msra.mxu0 0.0
  %539 = vmatprep.subr.mxu0 0.0
  %540 = vmatpush1.msra.mxu0 0.0
  %541 = vmatprep.subr.mxu0 0.0
  %542 = vmatpush1.msra.mxu0 0.0
  %543 = vmatprep.subr.mxu0 0.0
  %544 = vmatpush1.msra.mxu0 0.0
  %545 = vmatprep.subr.mxu0 0.0
  %546 = vmatpush1.msra.mxu0 0.0
  %547 = vmatprep.subr.mxu0 0.0
  %548 = vmatpush1.msra.mxu0 0.0
  %549 = vmatprep.subr.mxu0 0.0
  %550 = vmatpush1.msra.mxu0 0.0
  %551 = vmatprep.subr.mxu0 0.0
  %552 = vmatpush1.msra.mxu0 0.0
  %553 = vmatprep.subr.mxu0 0.0
  %554 = vmatpush1.msra.mxu0 0.0
  %555 = vmatprep.subr.mxu0 0.0
  %556 = vmatpush1.msra.mxu0 0.0
  %557 = vmatprep.subr.mxu0 0.0
  %558 = vmatpush1.msra.mxu0 0.0
  %559 = vmatprep.subr.mxu0 0.0
  %560 = vmatpush1.msra.mxu0 0.0
  %561 = vmatprep.subr.mxu0 0.0
  %562 = vmatpush1.msra.mxu0 0.0
  %563 = vmatprep.subr.mxu0 0.0
  %564 = vmatpush1.msra.mxu0 0.0
  %565 = vmatprep.subr.mxu0 0.0
  %566 = vmatpush1.msra.mxu0 0.0
  %567 = vmatprep.subr.mxu0 0.0
  %568 = vmatpush1.msra.mxu0 0.0
  %569 = vmatprep.subr.mxu0 0.0
  %570 = vmatpush1.msra.mxu0 0.0
  %571 = vmatprep.subr.mxu0 0.0
  %572 = vmatpush1.msra.mxu0 0.0
  %573 = vmatprep.subr.mxu0 0.0
  %574 = vmatpush1.msra.mxu0 0.0
  %575 = vmatprep.subr.mxu0 0.0
  %576 = vmatpush1.msra.mxu0 0.0
  %577 = vmatprep.mubr.f32.mxu0 0.0
  %578 = vmatmul.mubr.f32.gmra.mrb[0].mxu0 %v511
  %v579 = vpop.f32.mrb[0].mxu0
  %v580 = vadd.f32 0.0, %v579
  %v581 = vpop.f32.mrb[0].mxu0
  %582 = vdwg.mxu0
  %v583 = vadd.f32 %v178, %v580
  %v584 = vxor.u32 %v583, 2147483648
  %v585 = vmul.f32 %v584, 1.442695
  %v586 = vpow.pop %v585
  %v587 = vadd.f32 %v586, 1.0
  %v588 = vrcp.pop %v587
  %v589 = vmul.f32 1.0, %v588
  %v590 = vtanh.pop %v583
  %v591 = vmul.f32 %v589, %v498
  %593 = vrot.lane.b32.xlu0 %v590, 64
  %v594 = vpop.permute.xlu0 %593
  %v596 = vmul.f32 %v589, %v594
  %598 = vrot.lane.b32.xlu0 %v596, 32
  %v599 = vpop.permute.xlu0 %598
  %v601 = vadd.f32 %v591, %v599
  %v602 = vtanh.pop %v601
  %604 = vrot.lane.b32.xlu0 %v602, 64
  %v605 = vpop.permute.xlu0 %604
  %v607 = vmul.f32 %v589, %v605
  %609 = vrot.lane.b32.xlu0 %v607, 32
  %v610 = vpop.permute.xlu0 %609
  %s612 = scalar_lea.vmem [#allocation2], 24
  %613 = vst.msk [vmem:[%s612] sm:$0xff] %vm201, %v610
  %v614 = vsel %vm201, %v610, 0
  %616 = vmatprep.subr.mxu0 0.0
  %617 = vmatpush1.msra.mxu0 %v58
  %618 = vmatprep.subr.mxu0 0.0
  %619 = vmatpush1.msra.mxu0 %v59
  %620 = vmatprep.subr.mxu0 0.0
  %621 = vmatpush1.msra.mxu0 %v60
  %622 = vmatprep.subr.mxu0 0.0
  %623 = vmatpush1.msra.mxu0 %v61
  %624 = vmatprep.subr.mxu0 0.0
  %625 = vmatpush1.msra.mxu0 0.0
  %626 = vmatprep.subr.mxu0 0.0
  %627 = vmatpush1.msra.mxu0 0.0
  %628 = vmatprep.subr.mxu0 0.0
  %629 = vmatpush1.msra.mxu0 0.0
  %630 = vmatprep.subr.mxu0 0.0
  %631 = vmatpush1.msra.mxu0 0.0
  %632 = vmatprep.subr.mxu0 0.0
  %633 = vmatpush1.msra.mxu0 0.0
  %634 = vmatprep.subr.mxu0 0.0
  %635 = vmatpush1.msra.mxu0 0.0
  %636 = vmatprep.subr.mxu0 0.0
  %637 = vmatpush1.msra.mxu0 0.0
  %638 = vmatprep.subr.mxu0 0.0
  %639 = vmatpush1.msra.mxu0 0.0
  %640 = vmatprep.subr.mxu0 0.0
  %641 = vmatpush1.msra.mxu0 0.0
  %642 = vmatprep.subr.mxu0 0.0
  %643 = vmatpush1.msra.mxu0 0.0
  %644 = vmatprep.subr.mxu0 0.0
  %645 = vmatpush1.msra.mxu0 0.0
  %646 = vmatprep.subr.mxu0 0.0
  %647 = vmatpush1.msra.mxu0 0.0
  %648 = vmatprep.subr.mxu0 0.0
  %649 = vmatpush1.msra.mxu0 0.0
  %650 = vmatprep.subr.mxu0 0.0
  %651 = vmatpush1.msra.mxu0 0.0
  %652 = vmatprep.subr.mxu0 0.0
  %653 = vmatpush1.msra.mxu0 0.0
  %654 = vmatprep.subr.mxu0 0.0
  %655 = vmatpush1.msra.mxu0 0.0
  %656 = vmatprep.subr.mxu0 0.0
  %657 = vmatpush1.msra.mxu0 0.0
  %658 = vmatprep.subr.mxu0 0.0
  %659 = vmatpush1.msra.mxu0 0.0
  %660 = vmatprep.subr.mxu0 0.0
  %661 = vmatpush1.msra.mxu0 0.0
  %662 = vmatprep.subr.mxu0 0.0
  %663 = vmatpush1.msra.mxu0 0.0
  %664 = vmatprep.subr.mxu0 0.0
  %665 = vmatpush1.msra.mxu0 0.0
  %666 = vmatprep.subr.mxu0 0.0
  %667 = vmatpush1.msra.mxu0 0.0
  %668 = vmatprep.subr.mxu0 0.0
  %669 = vmatpush1.msra.mxu0 0.0
  %670 = vmatprep.subr.mxu0 0.0
  %671 = vmatpush1.msra.mxu0 0.0
  %672 = vmatprep.subr.mxu0 0.0
  %673 = vmatpush1.msra.mxu0 0.0
  %674 = vmatprep.subr.mxu0 0.0
  %675 = vmatpush1.msra.mxu0 0.0
  %676 = vmatprep.subr.mxu0 0.0
  %677 = vmatpush1.msra.mxu0 0.0
  %678 = vmatprep.subr.mxu0 0.0
  %679 = vmatpush1.msra.mxu0 0.0
  %680 = vmatprep.mubr.f32.mxu0 0.0
  %681 = vmatmul.mubr.f32.gmra.mrb[0].mxu0 %v614
  %v682 = vpop.f32.mrb[0].mxu0
  %v683 = vadd.f32 0.0, %v682
  %v684 = vpop.f32.mrb[0].mxu0
  %685 = vdwg.mxu0
  %v686 = vadd.f32 %v183, %v683
  %v687 = vxor.u32 %v686, 2147483648
  %v688 = vmul.f32 %v687, 1.442695
  %v689 = vpow.pop %v688
  %v690 = vadd.f32 %v689, 1.0
  %v691 = vrcp.pop %v690
  %v692 = vmul.f32 1.0, %v691
  %v693 = vtanh.pop %v686
  %v694 = vmul.f32 %v692, %v601
  %696 = vrot.lane.b32.xlu0 %v693, 64
  %v697 = vpop.permute.xlu0 %696
  %v699 = vmul.f32 %v692, %v697
  %701 = vrot.lane.b32.xlu0 %v699, 32
  %v702 = vpop.permute.xlu0 %701
  %v704 = vadd.f32 %v694, %v702
  %v705 = vtanh.pop %v704
  %707 = vrot.lane.b32.xlu0 %v705, 64
  %v708 = vpop.permute.xlu0 %707
  %v710 = vmul.f32 %v692, %v708
  %712 = vrot.lane.b32.xlu0 %v710, 32
  %v713 = vpop.permute.xlu0 %712
  %s715 = scalar_lea.vmem [#allocation2], 32
  %716 = vst.msk [vmem:[%s715] sm:$0xff] %vm201, %v713
  %v717 = vsel %vm201, %v713, 0
  %719 = vmatprep.subr.mxu0 0.0
  %720 = vmatpush1.msra.mxu0 %v58
  %721 = vmatprep.subr.mxu0 0.0
  %722 = vmatpush1.msra.mxu0 %v59
  %723 = vmatprep.subr.mxu0 0.0
  %724 = vmatpush1.msra.mxu0 %v60
  %725 = vmatprep.subr.mxu0 0.0
  %726 = vmatpush1.msra.mxu0 %v61
  %727 = vmatprep.subr.mxu0 0.0
  %728 = vmatpush1.msra.mxu0 0.0
  %729 = vmatprep.subr.mxu0 0.0
  %730 = vmatpush1.msra.mxu0 0.0
  %731 = vmatprep.subr.mxu0 0.0
  %732 = vmatpush1.msra.mxu0 0.0
  %733 = vmatprep.subr.mxu0 0.0
  %734 = vmatpush1.msra.mxu0 0.0
  %735 = vmatprep.subr.mxu0 0.0
  %736 = vmatpush1.msra.mxu0 0.0
  %737 = vmatprep.subr.mxu0 0.0
  %738 = vmatpush1.msra.mxu0 0.0
  %739 = vmatprep.subr.mxu0 0.0
  %740 = vmatpush1.msra.mxu0 0.0
  %741 = vmatprep.subr.mxu0 0.0
  %742 = vmatpush1.msra.mxu0 0.0
  %743 = vmatprep.subr.mxu0 0.0
  %744 = vmatpush1.msra.mxu0 0.0
  %745 = vmatprep.subr.mxu0 0.0
  %746 = vmatpush1.msra.mxu0 0.0
  %747 = vmatprep.subr.mxu0 0.0
  %748 = vmatpush1.msra.mxu0 0.0
  %749 = vmatprep.subr.mxu0 0.0
  %750 = vmatpush1.msra.mxu0 0.0
  %751 = vmatprep.subr.mxu0 0.0
  %752 = vmatpush1.msra.mxu0 0.0
  %753 = vmatprep.subr.mxu0 0.0
  %754 = vmatpush1.msra.mxu0 0.0
  %755 = vmatprep.subr.mxu0 0.0
  %756 = vmatpush1.msra.mxu0 0.0
  %757 = vmatprep.subr.mxu0 0.0
  %758 = vmatpush1.msra.mxu0 0.0
  %759 = vmatprep.subr.mxu0 0.0
  %760 = vmatpush1.msra.mxu0 0.0
  %761 = vmatprep.subr.mxu0 0.0
  %762 = vmatpush1.msra.mxu0 0.0
  %763 = vmatprep.subr.mxu0 0.0
  %764 = vmatpush1.msra.mxu0 0.0
  %765 = vmatprep.subr.mxu0 0.0
  %766 = vmatpush1.msra.mxu0 0.0
  %767 = vmatprep.subr.mxu0 0.0
  %768 = vmatpush1.msra.mxu0 0.0
  %769 = vmatprep.subr.mxu0 0.0
  %770 = vmatpush1.msra.mxu0 0.0
  %771 = vmatprep.subr.mxu0 0.0
  %772 = vmatpush1.msra.mxu0 0.0
  %773 = vmatprep.subr.mxu0 0.0
  %774 = vmatpush1.msra.mxu0 0.0
  %775 = vmatprep.subr.mxu0 0.0
  %776 = vmatpush1.msra.mxu0 0.0
  %777 = vmatprep.subr.mxu0 0.0
  %778 = vmatpush1.msra.mxu0 0.0
  %779 = vmatprep.subr.mxu0 0.0
  %780 = vmatpush1.msra.mxu0 0.0
  %781 = vmatprep.subr.mxu0 0.0
  %782 = vmatpush1.msra.mxu0 0.0
  %783 = vmatprep.mubr.f32.mxu0 0.0
  %784 = vmatmul.mubr.f32.gmra.mrb[0].mxu0 %v717
  %v785 = vpop.f32.mrb[0].mxu0
  %v786 = vadd.f32 0.0, %v785
  %v787 = vpop.f32.mrb[0].mxu0
  %788 = vdwg.mxu0
  %v789 = vadd.f32 %v188, %v786
  %v790 = vxor.u32 %v789, 2147483648
  %v791 = vmul.f32 %v790, 1.442695
  %v792 = vpow.pop %v791
  %v793 = vadd.f32 %v792, 1.0
  %v794 = vrcp.pop %v793
  %v795 = vmul.f32 1.0, %v794
  %v796 = vtanh.pop %v789
  %v797 = vmul.f32 %v795, %v704
  %799 = vrot.lane.b32.xlu0 %v796, 64
  %v800 = vpop.permute.xlu0 %799
  %v802 = vmul.f32 %v795, %v800
  %804 = vrot.lane.b32.xlu0 %v802, 32
  %v805 = vpop.permute.xlu0 %804
  %v807 = vadd.f32 %v797, %v805
  %v808 = vtanh.pop %v807
  %810 = vrot.lane.b32.xlu0 %v808, 64
  %v811 = vpop.permute.xlu0 %810
  %v813 = vmul.f32 %v795, %v811
  %815 = vrot.lane.b32.xlu0 %v813, 32
  %v816 = vpop.permute.xlu0 %815
  %s818 = scalar_lea.vmem [#allocation2], 40
  %819 = vst.msk [vmem:[%s818] sm:$0xff] %vm201, %v816
  %v820 = vsel %vm201, %v816, 0
  %822 = vmatprep.subr.mxu0 0.0
  %823 = vmatpush1.msra.mxu0 %v58
  %824 = vmatprep.subr.mxu0 0.0
  %825 = vmatpush1.msra.mxu0 %v59
  %826 = vmatprep.subr.mxu0 0.0
  %827 = vmatpush1.msra.mxu0 %v60
  %828 = vmatprep.subr.mxu0 0.0
  %829 = vmatpush1.msra.mxu0 %v61
  %830 = vmatprep.subr.mxu0 0.0
  %831 = vmatpush1.msra.mxu0 0.0
  %832 = vmatprep.subr.mxu0 0.0
  %833 = vmatpush1.msra.mxu0 0.0
  %834 = vmatprep.subr.mxu0 0.0
  %835 = vmatpush1.msra.mxu0 0.0
  %836 = vmatprep.subr.mxu0 0.0
  %837 = vmatpush1.msra.mxu0 0.0
  %838 = vmatprep.subr.mxu0 0.0
  %839 = vmatpush1.msra.mxu0 0.0
  %840 = vmatprep.subr.mxu0 0.0
  %841 = vmatpush1.msra.mxu0 0.0
  %842 = vmatprep.subr.mxu0 0.0
  %843 = vmatpush1.msra.mxu0 0.0
  %844 = vmatprep.subr.mxu0 0.0
  %845 = vmatpush1.msra.mxu0 0.0
  %846 = vmatprep.subr.mxu0 0.0
  %847 = vmatpush1.msra.mxu0 0.0
  %848 = vmatprep.subr.mxu0 0.0
  %849 = vmatpush1.msra.mxu0 0.0
  %850 = vmatprep.subr.mxu0 0.0
  %851 = vmatpush1.msra.mxu0 0.0
  %852 = vmatprep.subr.mxu0 0.0
  %853 = vmatpush1.msra.mxu0 0.0
  %854 = vmatprep.subr.mxu0 0.0
  %855 = vmatpush1.msra.mxu0 0.0
  %856 = vmatprep.subr.mxu0 0.0
  %857 = vmatpush1.msra.mxu0 0.0
  %858 = vmatprep.subr.mxu0 0.0
  %859 = vmatpush1.msra.mxu0 0.0
  %860 = vmatprep.subr.mxu0 0.0
  %861 = vmatpush1.msra.mxu0 0.0
  %862 = vmatprep.subr.mxu0 0.0
  %863 = vmatpush1.msra.mxu0 0.0
  %864 = vmatprep.subr.mxu0 0.0
  %865 = vmatpush1.msra.mxu0 0.0
  %866 = vmatprep.subr.mxu0 0.0
  %867 = vmatpush1.msra.mxu0 0.0
  %868 = vmatprep.subr.mxu0 0.0
  %869 = vmatpush1.msra.mxu0 0.0
  %870 = vmatprep.subr.mxu0 0.0
  %871 = vmatpush1.msra.mxu0 0.0
  %872 = vmatprep.subr.mxu0 0.0
  %873 = vmatpush1.msra.mxu0 0.0
  %874 = vmatprep.subr.mxu0 0.0
  %875 = vmatpush1.msra.mxu0 0.0
  %876 = vmatprep.subr.mxu0 0.0
  %877 = vmatpush1.msra.mxu0 0.0
  %878 = vmatprep.subr.mxu0 0.0
  %879 = vmatpush1.msra.mxu0 0.0
  %880 = vmatprep.subr.mxu0 0.0
  %881 = vmatpush1.msra.mxu0 0.0
  %882 = vmatprep.subr.mxu0 0.0
  %883 = vmatpush1.msra.mxu0 0.0
  %884 = vmatprep.subr.mxu0 0.0
  %885 = vmatpush1.msra.mxu0 0.0
  %886 = vmatprep.mubr.f32.mxu0 0.0
  %887 = vmatmul.mubr.f32.gmra.mrb[0].mxu0 %v820
  %v888 = vpop.f32.mrb[0].mxu0
  %v889 = vadd.f32 0.0, %v888
  %v890 = vpop.f32.mrb[0].mxu0
  %891 = vdwg.mxu0
  %v892 = vadd.f32 %v193, %v889
  %v893 = vxor.u32 %v892, 2147483648
  %v894 = vmul.f32 %v893, 1.442695
  %v895 = vpow.pop %v894
  %v896 = vadd.f32 %v895, 1.0
  %v897 = vrcp.pop %v896
  %v898 = vmul.f32 1.0, %v897
  %v899 = vtanh.pop %v892
  %v900 = vmul.f32 %v898, %v807
  %902 = vrot.lane.b32.xlu0 %v899, 64
  %v903 = vpop.permute.xlu0 %902
  %v905 = vmul.f32 %v898, %v903
  %907 = vrot.lane.b32.xlu0 %v905, 32
  %v908 = vpop.permute.xlu0 %907
  %v910 = vadd.f32 %v900, %v908
  %v911 = vtanh.pop %v910
  %913 = vrot.lane.b32.xlu0 %v911, 64
  %v914 = vpop.permute.xlu0 %913
  %v916 = vmul.f32 %v898, %v914
  %918 = vrot.lane.b32.xlu0 %v916, 32
  %v919 = vpop.permute.xlu0 %918
  %s921 = scalar_lea.vmem [#allocation2], 48
  %922 = vst.msk [vmem:[%s921] sm:$0xff] %vm201, %v919
  %v923 = vsel %vm201, %v919, 0
  %925 = vmatprep.subr.mxu0 0.0
  %926 = vmatpush1.msra.mxu0 %v58
  %927 = vmatprep.subr.mxu0 0.0
  %928 = vmatpush1.msra.mxu0 %v59
  %929 = vmatprep.subr.mxu0 0.0
  %930 = vmatpush1.msra.mxu0 %v60
  %931 = vmatprep.subr.mxu0 0.0
  %932 = vmatpush1.msra.mxu0 %v61
  %933 = vmatprep.subr.mxu0 0.0
  %934 = vmatpush1.msra.mxu0 0.0
  %935 = vmatprep.subr.mxu0 0.0
  %936 = vmatpush1.msra.mxu0 0.0
  %937 = vmatprep.subr.mxu0 0.0
  %938 = vmatpush1.msra.mxu0 0.0
  %939 = vmatprep.subr.mxu0 0.0
  %940 = vmatpush1.msra.mxu0 0.0
  %941 = vmatprep.subr.mxu0 0.0
  %942 = vmatpush1.msra.mxu0 0.0
  %943 = vmatprep.subr.mxu0 0.0
  %944 = vmatpush1.msra.mxu0 0.0
  %945 = vmatprep.subr.mxu0 0.0
  %946 = vmatpush1.msra.mxu0 0.0
  %947 = vmatprep.subr.mxu0 0.0
  %948 = vmatpush1.msra.mxu0 0.0
  %949 = vmatprep.subr.mxu0 0.0
  %950 = vmatpush1.msra.mxu0 0.0
  %951 = vmatprep.subr.mxu0 0.0
  %952 = vmatpush1.msra.mxu0 0.0
  %953 = vmatprep.subr.mxu0 0.0
  %954 = vmatpush1.msra.mxu0 0.0
  %955 = vmatprep.subr.mxu0 0.0
  %956 = vmatpush1.msra.mxu0 0.0
  %957 = vmatprep.subr.mxu0 0.0
  %958 = vmatpush1.msra.mxu0 0.0
  %959 = vmatprep.subr.mxu0 0.0
  %960 = vmatpush1.msra.mxu0 0.0
  %961 = vmatprep.subr.mxu0 0.0
  %962 = vmatpush1.msra.mxu0 0.0
  %963 = vmatprep.subr.mxu0 0.0
  %964 = vmatpush1.msra.mxu0 0.0
  %965 = vmatprep.subr.mxu0 0.0
  %966 = vmatpush1.msra.mxu0 0.0
  %967 = vmatprep.subr.mxu0 0.0
  %968 = vmatpush1.msra.mxu0 0.0
  %969 = vmatprep.subr.mxu0 0.0
  %970 = vmatpush1.msra.mxu0 0.0
  %971 = vmatprep.subr.mxu0 0.0
  %972 = vmatpush1.msra.mxu0 0.0
  %973 = vmatprep.subr.mxu0 0.0
  %974 = vmatpush1.msra.mxu0 0.0
  %975 = vmatprep.subr.mxu0 0.0
  %976 = vmatpush1.msra.mxu0 0.0
  %977 = vmatprep.subr.mxu0 0.0
  %978 = vmatpush1.msra.mxu0 0.0
  %979 = vmatprep.subr.mxu0 0.0
  %980 = vmatpush1.msra.mxu0 0.0
  %981 = vmatprep.subr.mxu0 0.0
  %982 = vmatpush1.msra.mxu0 0.0
  %983 = vmatprep.subr.mxu0 0.0
  %984 = vmatpush1.msra.mxu0 0.0
  %985 = vmatprep.subr.mxu0 0.0
  %986 = vmatpush1.msra.mxu0 0.0
  %987 = vmatprep.subr.mxu0 0.0
  %988 = vmatpush1.msra.mxu0 0.0
  %989 = vmatprep.mubr.f32.mxu0 0.0
  %990 = vmatmul.mubr.f32.gmra.mrb[0].mxu0 %v923
  %v991 = vpop.f32.mrb[0].mxu0
  %v992 = vadd.f32 0.0, %v991
  %v993 = vpop.f32.mrb[0].mxu0
  %994 = vdwg.mxu0
  %v995 = vadd.f32 %v198, %v992
  %v996 = vxor.u32 %v995, 2147483648
  %v997 = vmul.f32 %v996, 1.442695
  %v998 = vpow.pop %v997
  %v999 = vadd.f32 %v998, 1.0
  %v1000 = vrcp.pop %v999
  %v1001 = vmul.f32 1.0, %v1000
  %v1002 = vtanh.pop %v995
  %v1003 = vmul.f32 %v1001, %v910
  %1005 = vrot.lane.b32.xlu0 %v1002, 64
  %v1006 = vpop.permute.xlu0 %1005
  %v1008 = vmul.f32 %v1001, %v1006
  %1010 = vrot.lane.b32.xlu0 %v1008, 32
  %v1011 = vpop.permute.xlu0 %1010
  %v1013 = vadd.f32 %v1003, %v1011
  %v1014 = vtanh.pop %v1013
  %1016 = vrot.lane.b32.xlu0 %v1014, 64
  %v1017 = vpop.permute.xlu0 %1016
  %v1019 = vmul.f32 %v1001, %v1017
  %1021 = vrot.lane.b32.xlu0 %v1019, 32
  %v1022 = vpop.permute.xlu0 %1021
  %s1024 = scalar_lea.vmem [#allocation2], 56
  %1025 = vst.msk [vmem:[%s1024] sm:$0xff] %vm201, %v1022
  %v1026 = vld [vmem:[#allocation2] sm:$0xff]
  %v1027 = vld [vmem:[#allocation2 + $0x8] sm:$0xff]
  %v1028 = vld [vmem:[#allocation2 + $0x10] sm:$0xff]
  %v1029 = vld [vmem:[#allocation2 + $0x18] sm:$0xff]
  %v1030 = vld [vmem:[#allocation2 + $0x20] sm:$0xff]
  %v1031 = vld [vmem:[#allocation2 + $0x28] sm:$0xff]
  %v1032 = vld [vmem:[#allocation2 + $0x30] sm:$0xff]
  %v1033 = vld [vmem:[#allocation2 + $0x38] sm:$0xff]
  %v1034 = vld [vmem:[%s5] sm:$0xff]
  %v1035 = vld [vmem:[%s5 + $0x8] sm:$0xff]
  %v1036 = vld [vmem:[%s5 + $0x10] sm:$0xff]
  %v1037 = vld [vmem:[%s5 + $0x18] sm:$0xff]
  %v1038 = vld [vmem:[%s6] sm:$0x1]
  %v1039 = vld [vmem:[%s4] sm:$0xff]
  %v1040 = vld [vmem:[%s4 + $0x8] sm:$0xff]
  %v1041 = vld [vmem:[%s4 + $0x10] sm:$0xff]
  %v1042 = vld [vmem:[%s4 + $0x18] sm:$0xff]
  %v1044 = vlaneseq
  %v1045 = vshrl.u32 %v1044, 7
  %v1046 = vsub.s32 0, %v1045
  %v1047 = vrot.slane %v1038, %v1046
  %v1050 = vsel %vm201, %v1026, 0
  %v1053 = vsel %vm201, %v1027, 0
  %v1056 = vsel %vm201, %v1028, 0
  %v1059 = vsel %vm201, %v1029, 0
  %v1062 = vsel %vm201, %v1030, 0
  %v1065 = vsel %vm201, %v1031, 0
  %v1068 = vsel %vm201, %v1032, 0
  %v1071 = vsel %vm201, %v1033, 0
  %1073 = vmatprep.subr.mxu0 0.0
  %1074 = vmatpush1.msra.mxu0 %v1039
  %1075 = vmatprep.subr.mxu0 0.0
  %1076 = vmatpush1.msra.mxu0 %v1040
  %1077 = vmatprep.subr.mxu0 0.0
  %1078 = vmatpush1.msra.mxu0 %v1041
  %1079 = vmatprep.subr.mxu0 0.0
  %1080 = vmatpush1.msra.mxu0 %v1042
  %1081 = vmatprep.subr.mxu0 0.0
  %1082 = vmatpush1.msra.mxu0 0.0
  %1083 = vmatprep.subr.mxu0 0.0
  %1084 = vmatpush1.msra.mxu0 0.0
  %1085 = vmatprep.subr.mxu0 0.0
  %1086 = vmatpush1.msra.mxu0 0.0
  %1087 = vmatprep.subr.mxu0 0.0
  %1088 = vmatpush1.msra.mxu0 0.0
  %1089 = vmatprep.subr.mxu0 0.0
  %1090 = vmatpush1.msra.mxu0 0.0
  %1091 = vmatprep.subr.mxu0 0.0
  %1092 = vmatpush1.msra.mxu0 0.0
  %1093 = vmatprep.subr.mxu0 0.0
  %1094 = vmatpush1.msra.mxu0 0.0
  %1095 = vmatprep.subr.mxu0 0.0
  %1096 = vmatpush1.msra.mxu0 0.0
  %1097 = vmatprep.subr.mxu0 0.0
  %1098 = vmatpush1.msra.mxu0 0.0
  %1099 = vmatprep.subr.mxu0 0.0
  %1100 = vmatpush1.msra.mxu0 0.0
  %1101 = vmatprep.subr.mxu0 0.0
  %1102 = vmatpush1.msra.mxu0 0.0
  %1103 = vmatprep.subr.mxu0 0.0
  %1104 = vmatpush1.msra.mxu0 0.0
  %1105 = vmatprep.subr.mxu0 0.0
  %1106 = vmatpush1.msra.mxu0 0.0
  %1107 = vmatprep.subr.mxu0 0.0
  %1108 = vmatpush1.msra.mxu0 0.0
  %1109 = vmatprep.subr.mxu0 0.0
  %1110 = vmatpush1.msra.mxu0 0.0
  %1111 = vmatprep.subr.mxu0 0.0
  %1112 = vmatpush1.msra.mxu0 0.0
  %1113 = vmatprep.subr.mxu0 0.0
  %1114 = vmatpush1.msra.mxu0 0.0
  %1115 = vmatprep.subr.mxu0 0.0
  %1116 = vmatpush1.msra.mxu0 0.0
  %1117 = vmatprep.subr.mxu0 0.0
  %1118 = vmatpush1.msra.mxu0 0.0
  %1119 = vmatprep.subr.mxu0 0.0
  %1120 = vmatpush1.msra.mxu0 0.0
  %1121 = vmatprep.subr.mxu0 0.0
  %1122 = vmatpush1.msra.mxu0 0.0
  %1123 = vmatprep.subr.mxu0 0.0
  %1124 = vmatpush1.msra.mxu0 0.0
  %1125 = vmatprep.subr.mxu0 0.0
  %1126 = vmatpush1.msra.mxu0 0.0
  %1127 = vmatprep.subr.mxu0 0.0
  %1128 = vmatpush1.msra.mxu0 0.0
  %1129 = vmatprep.subr.mxu0 0.0
  %1130 = vmatpush1.msra.mxu0 0.0
  %1131 = vmatprep.subr.mxu0 0.0
  %1132 = vmatpush1.msra.mxu0 0.0
  %1133 = vmatprep.subr.mxu0 0.0
  %1134 = vmatpush1.msra.mxu0 0.0
  %1135 = vmatprep.subr.mxu0 0.0
  %1136 = vmatpush1.msra.mxu0 0.0
  %1137 = vmatprep.mubr.f32.mxu0 0.0
  %1138 = vmatmul.mubr.f32.gmra.mrb[0].mxu0 %v1050
  %v1139 = vpop.f32.mrb[0].mxu0
  %v1140 = vadd.f32 %v1047, %v1139
  %v1141 = vpop.f32.mrb[0].mxu0
  %1142 = vmatprep.mubr.f32.mxu0 0.0
  %1143 = vmatmul.mubr.f32.gmra.mrb[0].mxu0 %v1053
  %v1144 = vpop.f32.mrb[0].mxu0
  %v1145 = vadd.f32 %v1047, %v1144
  %v1146 = vpop.f32.mrb[0].mxu0
  %1147 = vmatprep.mubr.f32.mxu0 0.0
  %1148 = vmatmul.mubr.f32.gmra.mrb[0].mxu0 %v1056
  %v1149 = vpop.f32.mrb[0].mxu0
  %v1150 = vadd.f32 %v1047, %v1149
  %v1151 = vpop.f32.mrb[0].mxu0
  %1152 = vmatprep.mubr.f32.mxu0 0.0
  %1153 = vmatmul.mubr.f32.gmra.mrb[0].mxu0 %v1059
  %v1154 = vpop.f32.mrb[0].mxu0
  %v1155 = vadd.f32 %v1047, %v1154
  %v1156 = vpop.f32.mrb[0].mxu0
  %1157 = vmatprep.mubr.f32.mxu0 0.0
  %1158 = vmatmul.mubr.f32.gmra.mrb[0].mxu0 %v1062
  %v1159 = vpop.f32.mrb[0].mxu0
  %v1160 = vadd.f32 %v1047, %v1159
  %v1161 = vpop.f32.mrb[0].mxu0
  %1162 = vmatprep.mubr.f32.mxu0 0.0
  %1163 = vmatmul.mubr.f32.gmra.mrb[0].mxu0 %v1065
  %v1164 = vpop.f32.mrb[0].mxu0
  %v1165 = vadd.f32 %v1047, %v1164
  %v1166 = vpop.f32.mrb[0].mxu0
  %1167 = vmatprep.mubr.f32.mxu0 0.0
  %1168 = vmatmul.mubr.f32.gmra.mrb[0].mxu0 %v1068
  %v1169 = vpop.f32.mrb[0].mxu0
  %v1170 = vadd.f32 %v1047, %v1169
  %v1171 = vpop.f32.mrb[0].mxu0
  %1172 = vmatprep.mubr.f32.mxu0 0.0
  %1173 = vmatmul.mubr.f32.gmra.mrb[0].mxu0 %v1071
  %v1174 = vpop.f32.mrb[0].mxu0
  %v1175 = vadd.f32 %v1047, %v1174
  %v1176 = vpop.f32.mrb[0].mxu0
  %1177 = vdwg.mxu0
  %1178 = vmatprep.subr.mxu0 0.0
  %1179 = vmatpush1.msra.mxu0 %v1034
  %1180 = vmatprep.subr.mxu0 0.0
  %1181 = vmatpush1.msra.mxu0 %v1035
  %1182 = vmatprep.subr.mxu0 0.0
  %1183 = vmatpush1.msra.mxu0 %v1036
  %1184 = vmatprep.subr.mxu0 0.0
  %1185 = vmatpush1.msra.mxu0 %v1037
  %1186 = vmatprep.subr.mxu0 0.0
  %1187 = vmatpush1.msra.mxu0 0.0
  %1188 = vmatprep.subr.mxu0 0.0
  %1189 = vmatpush1.msra.mxu0 0.0
  %1190 = vmatprep.subr.mxu0 0.0
  %1191 = vmatpush1.msra.mxu0 0.0
  %1192 = vmatprep.subr.mxu0 0.0
  %1193 = vmatpush1.msra.mxu0 0.0
  %1194 = vmatprep.subr.mxu0 0.0
  %1195 = vmatpush1.msra.mxu0 0.0
  %1196 = vmatprep.subr.mxu0 0.0
  %1197 = vmatpush1.msra.mxu0 0.0
  %1198 = vmatprep.subr.mxu0 0.0
  %1199 = vmatpush1.msra.mxu0 0.0
  %1200 = vmatprep.subr.mxu0 0.0
  %1201 = vmatpush1.msra.mxu0 0.0
  %1202 = vmatprep.subr.mxu0 0.0
  %1203 = vmatpush1.msra.mxu0 0.0
  %1204 = vmatprep.subr.mxu0 0.0
  %1205 = vmatpush1.msra.mxu0 0.0
  %1206 = vmatprep.subr.mxu0 0.0
  %1207 = vmatpush1.msra.mxu0 0.0
  %1208 = vmatprep.subr.mxu0 0.0
  %1209 = vmatpush1.msra.mxu0 0.0
  %1210 = vmatprep.subr.mxu0 0.0
  %1211 = vmatpush1.msra.mxu0 0.0
  %1212 = vmatprep.subr.mxu0 0.0
  %1213 = vmatpush1.msra.mxu0 0.0
  %1214 = vmatprep.subr.mxu0 0.0
  %1215 = vmatpush1.msra.mxu0 0.0
  %1216 = vmatprep.subr.mxu0 0.0
  %1217 = vmatpush1.msra.mxu0 0.0
  %1218 = vmatprep.subr.mxu0 0.0
  %1219 = vmatpush1.msra.mxu0 0.0
  %1220 = vmatprep.subr.mxu0 0.0
  %1221 = vmatpush1.msra.mxu0 0.0
  %1222 = vmatprep.subr.mxu0 0.0
  %1223 = vmatpush1.msra.mxu0 0.0
  %1224 = vmatprep.subr.mxu0 0.0
  %1225 = vmatpush1.msra.mxu0 0.0
  %1226 = vmatprep.subr.mxu0 0.0
  %1227 = vmatpush1.msra.mxu0 0.0
  %1228 = vmatprep.subr.mxu0 0.0
  %1229 = vmatpush1.msra.mxu0 0.0
  %1230 = vmatprep.subr.mxu0 0.0
  %1231 = vmatpush1.msra.mxu0 0.0
  %1232 = vmatprep.subr.mxu0 0.0
  %1233 = vmatpush1.msra.mxu0 0.0
  %1234 = vmatprep.subr.mxu0 0.0
  %1235 = vmatpush1.msra.mxu0 0.0
  %1236 = vmatprep.subr.mxu0 0.0
  %1237 = vmatpush1.msra.mxu0 0.0
  %1238 = vmatprep.subr.mxu0 0.0
  %1239 = vmatpush1.msra.mxu0 0.0
  %1240 = vmatprep.subr.mxu0 0.0
  %1241 = vmatpush1.msra.mxu0 0.0
  %1242 = vmatprep.mubr.f32.mxu0 0.0
  %1243 = vmatmul.mubr.f32.gmra.mrb[0].mxu0 %v203
  %v1244 = vpop.f32.mrb[0].mxu0
  %v1245 = vadd.f32 0.0, %v1244
  %v1246 = vpop.f32.mrb[0].mxu0
  %1247 = vdwg.mxu0
  %v1248 = vadd.f32 %v1140, %v1245
  %v1249 = vxor.u32 %v1248, 2147483648
  %v1250 = vmul.f32 %v1249, 1.442695
  %v1251 = vpow.pop %v1250
  %v1252 = vadd.f32 %v1251, 1.0
  %v1253 = vrcp.pop %v1252
  %v1254 = vmul.f32 1.0, %v1253
  %v1255 = vtanh.pop %v1248
  %v1256 = vmul.f32 %v1254, 0.0
  %1258 = vrot.lane.b32.xlu0 %v1255, 64
  %v1259 = vpop.permute.xlu0 %1258
  %v1261 = vmul.f32 %v1254, %v1259
  %1263 = vrot.lane.b32.xlu0 %v1261, 32
  %v1264 = vpop.permute.xlu0 %1263
  %v1266 = vadd.f32 %v1256, %v1264
  %v1267 = vtanh.pop %v1266
  %1269 = vrot.lane.b32.xlu0 %v1267, 64
  %v1270 = vpop.permute.xlu0 %1269
  %v1272 = vmul.f32 %v1254, %v1270
  %1274 = vrot.lane.b32.xlu0 %v1272, 32
  %v1275 = vpop.permute.xlu0 %1274
  %v1276 = vsel %vm201, %v1275, 0
  %1278 = vmatprep.subr.mxu0 0.0
  %1279 = vmatpush1.msra.mxu0 %v1034
  %1280 = vmatprep.subr.mxu0 0.0
  %1281 = vmatpush1.msra.mxu0 %v1035
  %1282 = vmatprep.subr.mxu0 0.0
  %1283 = vmatpush1.msra.mxu0 %v1036
  %1284 = vmatprep.subr.mxu0 0.0
  %1285 = vmatpush1.msra.mxu0 %v1037
  %1286 = vmatprep.subr.mxu0 0.0
  %1287 = vmatpush1.msra.mxu0 0.0
  %1288 = vmatprep.subr.mxu0 0.0
  %1289 = vmatpush1.msra.mxu0 0.0
  %1290 = vmatprep.subr.mxu0 0.0
  %1291 = vmatpush1.msra.mxu0 0.0
  %1292 = vmatprep.subr.mxu0 0.0
  %1293 = vmatpush1.msra.mxu0 0.0
  %1294 = vmatprep.subr.mxu0 0.0
  %1295 = vmatpush1.msra.mxu0 0.0
  %1296 = vmatprep.subr.mxu0 0.0
  %1297 = vmatpush1.msra.mxu0 0.0
  %1298 = vmatprep.subr.mxu0 0.0
  %1299 = vmatpush1.msra.mxu0 0.0
  %1300 = vmatprep.subr.mxu0 0.0
  %1301 = vmatpush1.msra.mxu0 0.0
  %1302 = vmatprep.subr.mxu0 0.0
  %1303 = vmatpush1.msra.mxu0 0.0
  %1304 = vmatprep.subr.mxu0 0.0
  %1305 = vmatpush1.msra.mxu0 0.0
  %1306 = vmatprep.subr.mxu0 0.0
  %1307 = vmatpush1.msra.mxu0 0.0
  %1308 = vmatprep.subr.mxu0 0.0
  %1309 = vmatpush1.msra.mxu0 0.0
  %1310 = vmatprep.subr.mxu0 0.0
  %1311 = vmatpush1.msra.mxu0 0.0
  %1312 = vmatprep.subr.mxu0 0.0
  %1313 = vmatpush1.msra.mxu0 0.0
  %1314 = vmatprep.subr.mxu0 0.0
  %1315 = vmatpush1.msra.mxu0 0.0
  %1316 = vmatprep.subr.mxu0 0.0
  %1317 = vmatpush1.msra.mxu0 0.0
  %1318 = vmatprep.subr.mxu0 0.0
  %1319 = vmatpush1.msra.mxu0 0.0
  %1320 = vmatprep.subr.mxu0 0.0
  %1321 = vmatpush1.msra.mxu0 0.0
  %1322 = vmatprep.subr.mxu0 0.0
  %1323 = vmatpush1.msra.mxu0 0.0
  %1324 = vmatprep.subr.mxu0 0.0
  %1325 = vmatpush1.msra.mxu0 0.0
  %1326 = vmatprep.subr.mxu0 0.0
  %1327 = vmatpush1.msra.mxu0 0.0
  %1328 = vmatprep.subr.mxu0 0.0
  %1329 = vmatpush1.msra.mxu0 0.0
  %1330 = vmatprep.subr.mxu0 0.0
  %1331 = vmatpush1.msra.mxu0 0.0
  %1332 = vmatprep.subr.mxu0 0.0
  %1333 = vmatpush1.msra.mxu0 0.0
  %1334 = vmatprep.subr.mxu0 0.0
  %1335 = vmatpush1.msra.mxu0 0.0
  %1336 = vmatprep.subr.mxu0 0.0
  %1337 = vmatpush1.msra.mxu0 0.0
  %1338 = vmatprep.subr.mxu0 0.0
  %1339 = vmatpush1.msra.mxu0 0.0
  %1340 = vmatprep.subr.mxu0 0.0
  %1341 = vmatpush1.msra.mxu0 0.0
  %1342 = vmatprep.mubr.f32.mxu0 0.0
  %1343 = vmatmul.mubr.f32.gmra.mrb[0].mxu0 %v1276
  %v1344 = vpop.f32.mrb[0].mxu0
  %v1345 = vadd.f32 0.0, %v1344
  %v1346 = vpop.f32.mrb[0].mxu0
  %1347 = vdwg.mxu0
  %v1348 = vadd.f32 %v1145, %v1345
  %v1349 = vxor.u32 %v1348, 2147483648
  %v1350 = vmul.f32 %v1349, 1.442695
  %v1351 = vpow.pop %v1350
  %v1352 = vadd.f32 %v1351, 1.0
  %v1353 = vrcp.pop %v1352
  %v1354 = vmul.f32 1.0, %v1353
  %v1355 = vtanh.pop %v1348
  %v1356 = vmul.f32 %v1354, %v1266
  %1358 = vrot.lane.b32.xlu0 %v1355, 64
  %v1359 = vpop.permute.xlu0 %1358
  %v1361 = vmul.f32 %v1354, %v1359
  %1363 = vrot.lane.b32.xlu0 %v1361, 32
  %v1364 = vpop.permute.xlu0 %1363
  %v1366 = vadd.f32 %v1356, %v1364
  %v1367 = vtanh.pop %v1366
  %1369 = vrot.lane.b32.xlu0 %v1367, 64
  %v1370 = vpop.permute.xlu0 %1369
  %v1372 = vmul.f32 %v1354, %v1370
  %1374 = vrot.lane.b32.xlu0 %v1372, 32
  %v1375 = vpop.permute.xlu0 %1374
  %v1376 = vsel %vm201, %v1375, 0
  %1378 = vmatprep.subr.mxu0 0.0
  %1379 = vmatpush1.msra.mxu0 %v1034
  %1380 = vmatprep.subr.mxu0 0.0
  %1381 = vmatpush1.msra.mxu0 %v1035
  %1382 = vmatprep.subr.mxu0 0.0
  %1383 = vmatpush1.msra.mxu0 %v1036
  %1384 = vmatprep.subr.mxu0 0.0
  %1385 = vmatpush1.msra.mxu0 %v1037
  %1386 = vmatprep.subr.mxu0 0.0
  %1387 = vmatpush1.msra.mxu0 0.0
  %1388 = vmatprep.subr.mxu0 0.0
  %1389 = vmatpush1.msra.mxu0 0.0
  %1390 = vmatprep.subr.mxu0 0.0
  %1391 = vmatpush1.msra.mxu0 0.0
  %1392 = vmatprep.subr.mxu0 0.0
  %1393 = vmatpush1.msra.mxu0 0.0
  %1394 = vmatprep.subr.mxu0 0.0
  %1395 = vmatpush1.msra.mxu0 0.0
  %1396 = vmatprep.subr.mxu0 0.0
  %1397 = vmatpush1.msra.mxu0 0.0
  %1398 = vmatprep.subr.mxu0 0.0
  %1399 = vmatpush1.msra.mxu0 0.0
  %1400 = vmatprep.subr.mxu0 0.0
  %1401 = vmatpush1.msra.mxu0 0.0
  %1402 = vmatprep.subr.mxu0 0.0
  %1403 = vmatpush1.msra.mxu0 0.0
  %1404 = vmatprep.subr.mxu0 0.0
  %1405 = vmatpush1.msra.mxu0 0.0
  %1406 = vmatprep.subr.mxu0 0.0
  %1407 = vmatpush1.msra.mxu0 0.0
  %1408 = vmatprep.subr.mxu0 0.0
  %1409 = vmatpush1.msra.mxu0 0.0
  %1410 = vmatprep.subr.mxu0 0.0
  %1411 = vmatpush1.msra.mxu0 0.0
  %1412 = vmatprep.subr.mxu0 0.0
  %1413 = vmatpush1.msra.mxu0 0.0
  %1414 = vmatprep.subr.mxu0 0.0
  %1415 = vmatpush1.msra.mxu0 0.0
  %1416 = vmatprep.subr.mxu0 0.0
  %1417 = vmatpush1.msra.mxu0 0.0
  %1418 = vmatprep.subr.mxu0 0.0
  %1419 = vmatpush1.msra.mxu0 0.0
  %1420 = vmatprep.subr.mxu0 0.0
  %1421 = vmatpush1.msra.mxu0 0.0
  %1422 = vmatprep.subr.mxu0 0.0
  %1423 = vmatpush1.msra.mxu0 0.0
  %1424 = vmatprep.subr.mxu0 0.0
  %1425 = vmatpush1.msra.mxu0 0.0
  %1426 = vmatprep.subr.mxu0 0.0
  %1427 = vmatpush1.msra.mxu0 0.0
  %1428 = vmatprep.subr.mxu0 0.0
  %1429 = vmatpush1.msra.mxu0 0.0
  %1430 = vmatprep.subr.mxu0 0.0
  %1431 = vmatpush1.msra.mxu0 0.0
  %1432 = vmatprep.subr.mxu0 0.0
  %1433 = vmatpush1.msra.mxu0 0.0
  %1434 = vmatprep.subr.mxu0 0.0
  %1435 = vmatpush1.msra.mxu0 0.0
  %1436 = vmatprep.subr.mxu0 0.0
  %1437 = vmatpush1.msra.mxu0 0.0
  %1438 = vmatprep.subr.mxu0 0.0
  %1439 = vmatpush1.msra.mxu0 0.0
  %1440 = vmatprep.subr.mxu0 0.0
  %1441 = vmatpush1.msra.mxu0 0.0
  %1442 = vmatprep.mubr.f32.mxu0 0.0
  %1443 = vmatmul.mubr.f32.gmra.mrb[0].mxu0 %v1376
  %v1444 = vpop.f32.mrb[0].mxu0
  %v1445 = vadd.f32 0.0, %v1444
  %v1446 = vpop.f32.mrb[0].mxu0
  %1447 = vdwg.mxu0
  %v1448 = vadd.f32 %v1150, %v1445
  %v1449 = vxor.u32 %v1448, 2147483648
  %v1450 = vmul.f32 %v1449, 1.442695
  %v1451 = vpow.pop %v1450
  %v1452 = vadd.f32 %v1451, 1.0
  %v1453 = vrcp.pop %v1452
  %v1454 = vmul.f32 1.0, %v1453
  %v1455 = vtanh.pop %v1448
  %v1456 = vmul.f32 %v1454, %v1366
  %1458 = vrot.lane.b32.xlu0 %v1455, 64
  %v1459 = vpop.permute.xlu0 %1458
  %v1461 = vmul.f32 %v1454, %v1459
  %1463 = vrot.lane.b32.xlu0 %v1461, 32
  %v1464 = vpop.permute.xlu0 %1463
  %v1466 = vadd.f32 %v1456, %v1464
  %v1467 = vtanh.pop %v1466
  %1469 = vrot.lane.b32.xlu0 %v1467, 64
  %v1470 = vpop.permute.xlu0 %1469
  %v1472 = vmul.f32 %v1454, %v1470
  %1474 = vrot.lane.b32.xlu0 %v1472, 32
  %v1475 = vpop.permute.xlu0 %1474
  %v1476 = vsel %vm201, %v1475, 0
  %1478 = vmatprep.subr.mxu0 0.0
  %1479 = vmatpush1.msra.mxu0 %v1034
  %1480 = vmatprep.subr.mxu0 0.0
  %1481 = vmatpush1.msra.mxu0 %v1035
  %1482 = vmatprep.subr.mxu0 0.0
  %1483 = vmatpush1.msra.mxu0 %v1036
  %1484 = vmatprep.subr.mxu0 0.0
  %1485 = vmatpush1.msra.mxu0 %v1037
  %1486 = vmatprep.subr.mxu0 0.0
  %1487 = vmatpush1.msra.mxu0 0.0
  %1488 = vmatprep.subr.mxu0 0.0
  %1489 = vmatpush1.msra.mxu0 0.0
  %1490 = vmatprep.subr.mxu0 0.0
  %1491 = vmatpush1.msra.mxu0 0.0
  %1492 = vmatprep.subr.mxu0 0.0
  %1493 = vmatpush1.msra.mxu0 0.0
  %1494 = vmatprep.subr.mxu0 0.0
  %1495 = vmatpush1.msra.mxu0 0.0
  %1496 = vmatprep.subr.mxu0 0.0
  %1497 = vmatpush1.msra.mxu0 0.0
  %1498 = vmatprep.subr.mxu0 0.0
  %1499 = vmatpush1.msra.mxu0 0.0
  %1500 = vmatprep.subr.mxu0 0.0
  %1501 = vmatpush1.msra.mxu0 0.0
  %1502 = vmatprep.subr.mxu0 0.0
  %1503 = vmatpush1.msra.mxu0 0.0
  %1504 = vmatprep.subr.mxu0 0.0
  %1505 = vmatpush1.msra.mxu0 0.0
  %1506 = vmatprep.subr.mxu0 0.0
  %1507 = vmatpush1.msra.mxu0 0.0
  %1508 = vmatprep.subr.mxu0 0.0
  %1509 = vmatpush1.msra.mxu0 0.0
  %1510 = vmatprep.subr.mxu0 0.0
  %1511 = vmatpush1.msra.mxu0 0.0
  %1512 = vmatprep.subr.mxu0 0.0
  %1513 = vmatpush1.msra.mxu0 0.0
  %1514 = vmatprep.subr.mxu0 0.0
  %1515 = vmatpush1.msra.mxu0 0.0
  %1516 = vmatprep.subr.mxu0 0.0
  %1517 = vmatpush1.msra.mxu0 0.0
  %1518 = vmatprep.subr.mxu0 0.0
  %1519 = vmatpush1.msra.mxu0 0.0
  %1520 = vmatprep.subr.mxu0 0.0
  %1521 = vmatpush1.msra.mxu0 0.0
  %1522 = vmatprep.subr.mxu0 0.0
  %1523 = vmatpush1.msra.mxu0 0.0
  %1524 = vmatprep.subr.mxu0 0.0
  %1525 = vmatpush1.msra.mxu0 0.0
  %1526 = vmatprep.subr.mxu0 0.0
  %1527 = vmatpush1.msra.mxu0 0.0
  %1528 = vmatprep.subr.mxu0 0.0
  %1529 = vmatpush1.msra.mxu0 0.0
  %1530 = vmatprep.subr.mxu0 0.0
  %1531 = vmatpush1.msra.mxu0 0.0
  %1532 = vmatprep.subr.mxu0 0.0
  %1533 = vmatpush1.msra.mxu0 0.0
  %1534 = vmatprep.subr.mxu0 0.0
  %1535 = vmatpush1.msra.mxu0 0.0
  %1536 = vmatprep.subr.mxu0 0.0
  %1537 = vmatpush1.msra.mxu0 0.0
  %1538 = vmatprep.subr.mxu0 0.0
  %1539 = vmatpush1.msra.mxu0 0.0
  %1540 = vmatprep.subr.mxu0 0.0
  %1541 = vmatpush1.msra.mxu0 0.0
  %1542 = vmatprep.mubr.f32.mxu0 0.0
  %1543 = vmatmul.mubr.f32.gmra.mrb[0].mxu0 %v1476
  %v1544 = vpop.f32.mrb[0].mxu0
  %v1545 = vadd.f32 0.0, %v1544
  %v1546 = vpop.f32.mrb[0].mxu0
  %1547 = vdwg.mxu0
  %v1548 = vadd.f32 %v1155, %v1545
  %v1549 = vxor.u32 %v1548, 2147483648
  %v1550 = vmul.f32 %v1549, 1.442695
  %v1551 = vpow.pop %v1550
  %v1552 = vadd.f32 %v1551, 1.0
  %v1553 = vrcp.pop %v1552
  %v1554 = vmul.f32 1.0, %v1553
  %v1555 = vtanh.pop %v1548
  %v1556 = vmul.f32 %v1554, %v1466
  %1558 = vrot.lane.b32.xlu0 %v1555, 64
  %v1559 = vpop.permute.xlu0 %1558
  %v1561 = vmul.f32 %v1554, %v1559
  %1563 = vrot.lane.b32.xlu0 %v1561, 32
  %v1564 = vpop.permute.xlu0 %1563
  %v1566 = vadd.f32 %v1556, %v1564
  %v1567 = vtanh.pop %v1566
  %1569 = vrot.lane.b32.xlu0 %v1567, 64
  %v1570 = vpop.permute.xlu0 %1569
  %v1572 = vmul.f32 %v1554, %v1570
  %1574 = vrot.lane.b32.xlu0 %v1572, 32
  %v1575 = vpop.permute.xlu0 %1574
  %v1576 = vsel %vm201, %v1575, 0
  %1578 = vmatprep.subr.mxu0 0.0
  %1579 = vmatpush1.msra.mxu0 %v1034
  %1580 = vmatprep.subr.mxu0 0.0
  %1581 = vmatpush1.msra.mxu0 %v1035
  %1582 = vmatprep.subr.mxu0 0.0
  %1583 = vmatpush1.msra.mxu0 %v1036
  %1584 = vmatprep.subr.mxu0 0.0
  %1585 = vmatpush1.msra.mxu0 %v1037
  %1586 = vmatprep.subr.mxu0 0.0
  %1587 = vmatpush1.msra.mxu0 0.0
  %1588 = vmatprep.subr.mxu0 0.0
  %1589 = vmatpush1.msra.mxu0 0.0
  %1590 = vmatprep.subr.mxu0 0.0
  %1591 = vmatpush1.msra.mxu0 0.0
  %1592 = vmatprep.subr.mxu0 0.0
  %1593 = vmatpush1.msra.mxu0 0.0
  %1594 = vmatprep.subr.mxu0 0.0
  %1595 = vmatpush1.msra.mxu0 0.0
  %1596 = vmatprep.subr.mxu0 0.0
  %1597 = vmatpush1.msra.mxu0 0.0
  %1598 = vmatprep.subr.mxu0 0.0
  %1599 = vmatpush1.msra.mxu0 0.0
  %1600 = vmatprep.subr.mxu0 0.0
  %1601 = vmatpush1.msra.mxu0 0.0
  %1602 = vmatprep.subr.mxu0 0.0
  %1603 = vmatpush1.msra.mxu0 0.0
  %1604 = vmatprep.subr.mxu0 0.0
  %1605 = vmatpush1.msra.mxu0 0.0
  %1606 = vmatprep.subr.mxu0 0.0
  %1607 = vmatpush1.msra.mxu0 0.0
  %1608 = vmatprep.subr.mxu0 0.0
  %1609 = vmatpush1.msra.mxu0 0.0
  %1610 = vmatprep.subr.mxu0 0.0
  %1611 = vmatpush1.msra.mxu0 0.0
  %1612 = vmatprep.subr.mxu0 0.0
  %1613 = vmatpush1.msra.mxu0 0.0
  %1614 = vmatprep.subr.mxu0 0.0
  %1615 = vmatpush1.msra.mxu0 0.0
  %1616 = vmatprep.subr.mxu0 0.0
  %1617 = vmatpush1.msra.mxu0 0.0
  %1618 = vmatprep.subr.mxu0 0.0
  %1619 = vmatpush1.msra.mxu0 0.0
  %1620 = vmatprep.subr.mxu0 0.0
  %1621 = vmatpush1.msra.mxu0 0.0
  %1622 = vmatprep.subr.mxu0 0.0
  %1623 = vmatpush1.msra.mxu0 0.0
  %1624 = vmatprep.subr.mxu0 0.0
  %1625 = vmatpush1.msra.mxu0 0.0
  %1626 = vmatprep.subr.mxu0 0.0
  %1627 = vmatpush1.msra.mxu0 0.0
  %1628 = vmatprep.subr.mxu0 0.0
  %1629 = vmatpush1.msra.mxu0 0.0
  %1630 = vmatprep.subr.mxu0 0.0
  %1631 = vmatpush1.msra.mxu0 0.0
  %1632 = vmatprep.subr.mxu0 0.0
  %1633 = vmatpush1.msra.mxu0 0.0
  %1634 = vmatprep.subr.mxu0 0.0
  %1635 = vmatpush1.msra.mxu0 0.0
  %1636 = vmatprep.subr.mxu0 0.0
  %1637 = vmatpush1.msra.mxu0 0.0
  %1638 = vmatprep.subr.mxu0 0.0
  %1639 = vmatpush1.msra.mxu0 0.0
  %1640 = vmatprep.subr.mxu0 0.0
  %1641 = vmatpush1.msra.mxu0 0.0
  %1642 = vmatprep.mubr.f32.mxu0 0.0
  %1643 = vmatmul.mubr.f32.gmra.mrb[0].mxu0 %v1576
  %v1644 = vpop.f32.mrb[0].mxu0
  %v1645 = vadd.f32 0.0, %v1644
  %v1646 = vpop.f32.mrb[0].mxu0
  %1647 = vdwg.mxu0
  %v1648 = vadd.f32 %v1160, %v1645
  %v1649 = vxor.u32 %v1648, 2147483648
  %v1650 = vmul.f32 %v1649, 1.442695
  %v1651 = vpow.pop %v1650
  %v1652 = vadd.f32 %v1651, 1.0
  %v1653 = vrcp.pop %v1652
  %v1654 = vmul.f32 1.0, %v1653
  %v1655 = vtanh.pop %v1648
  %v1656 = vmul.f32 %v1654, %v1566
  %1658 = vrot.lane.b32.xlu0 %v1655, 64
  %v1659 = vpop.permute.xlu0 %1658
  %v1661 = vmul.f32 %v1654, %v1659
  %1663 = vrot.lane.b32.xlu0 %v1661, 32
  %v1664 = vpop.permute.xlu0 %1663
  %v1666 = vadd.f32 %v1656, %v1664
  %v1667 = vtanh.pop %v1666
  %1669 = vrot.lane.b32.xlu0 %v1667, 64
  %v1670 = vpop.permute.xlu0 %1669
  %v1672 = vmul.f32 %v1654, %v1670
  %1674 = vrot.lane.b32.xlu0 %v1672, 32
  %v1675 = vpop.permute.xlu0 %1674
  %v1676 = vsel %vm201, %v1675, 0
  %1678 = vmatprep.subr.mxu0 0.0
  %1679 = vmatpush1.msra.mxu0 %v1034
  %1680 = vmatprep.subr.mxu0 0.0
  %1681 = vmatpush1.msra.mxu0 %v1035
  %1682 = vmatprep.subr.mxu0 0.0
  %1683 = vmatpush1.msra.mxu0 %v1036
  %1684 = vmatprep.subr.mxu0 0.0
  %1685 = vmatpush1.msra.mxu0 %v1037
  %1686 = vmatprep.subr.mxu0 0.0
  %1687 = vmatpush1.msra.mxu0 0.0
  %1688 = vmatprep.subr.mxu0 0.0
  %1689 = vmatpush1.msra.mxu0 0.0
  %1690 = vmatprep.subr.mxu0 0.0
  %1691 = vmatpush1.msra.mxu0 0.0
  %1692 = vmatprep.subr.mxu0 0.0
  %1693 = vmatpush1.msra.mxu0 0.0
  %1694 = vmatprep.subr.mxu0 0.0
  %1695 = vmatpush1.msra.mxu0 0.0
  %1696 = vmatprep.subr.mxu0 0.0
  %1697 = vmatpush1.msra.mxu0 0.0
  %1698 = vmatprep.subr.mxu0 0.0
  %1699 = vmatpush1.msra.mxu0 0.0
  %1700 = vmatprep.subr.mxu0 0.0
  %1701 = vmatpush1.msra.mxu0 0.0
  %1702 = vmatprep.subr.mxu0 0.0
  %1703 = vmatpush1.msra.mxu0 0.0
  %1704 = vmatprep.subr.mxu0 0.0
  %1705 = vmatpush1.msra.mxu0 0.0
  %1706 = vmatprep.subr.mxu0 0.0
  %1707 = vmatpush1.msra.mxu0 0.0
  %1708 = vmatprep.subr.mxu0 0.0
  %1709 = vmatpush1.msra.mxu0 0.0
  %1710 = vmatprep.subr.mxu0 0.0
  %1711 = vmatpush1.msra.mxu0 0.0
  %1712 = vmatprep.subr.mxu0 0.0
  %1713 = vmatpush1.msra.mxu0 0.0
  %1714 = vmatprep.subr.mxu0 0.0
  %1715 = vmatpush1.msra.mxu0 0.0
  %1716 = vmatprep.subr.mxu0 0.0
  %1717 = vmatpush1.msra.mxu0 0.0
  %1718 = vmatprep.subr.mxu0 0.0
  %1719 = vmatpush1.msra.mxu0 0.0
  %1720 = vmatprep.subr.mxu0 0.0
  %1721 = vmatpush1.msra.mxu0 0.0
  %1722 = vmatprep.subr.mxu0 0.0
  %1723 = vmatpush1.msra.mxu0 0.0
  %1724 = vmatprep.subr.mxu0 0.0
  %1725 = vmatpush1.msra.mxu0 0.0
  %1726 = vmatprep.subr.mxu0 0.0
  %1727 = vmatpush1.msra.mxu0 0.0
  %1728 = vmatprep.subr.mxu0 0.0
  %1729 = vmatpush1.msra.mxu0 0.0
  %1730 = vmatprep.subr.mxu0 0.0
  %1731 = vmatpush1.msra.mxu0 0.0
  %1732 = vmatprep.subr.mxu0 0.0
  %1733 = vmatpush1.msra.mxu0 0.0
  %1734 = vmatprep.subr.mxu0 0.0
  %1735 = vmatpush1.msra.mxu0 0.0
  %1736 = vmatprep.subr.mxu0 0.0
  %1737 = vmatpush1.msra.mxu0 0.0
  %1738 = vmatprep.subr.mxu0 0.0
  %1739 = vmatpush1.msra.mxu0 0.0
  %1740 = vmatprep.subr.mxu0 0.0
  %1741 = vmatpush1.msra.mxu0 0.0
  %1742 = vmatprep.mubr.f32.mxu0 0.0
  %1743 = vmatmul.mubr.f32.gmra.mrb[0].mxu0 %v1676
  %v1744 = vpop.f32.mrb[0].mxu0
  %v1745 = vadd.f32 0.0, %v1744
  %v1746 = vpop.f32.mrb[0].mxu0
  %1747 = vdwg.mxu0
  %v1748 = vadd.f32 %v1165, %v1745
  %v1749 = vxor.u32 %v1748, 2147483648
  %v1750 = vmul.f32 %v1749, 1.442695
  %v1751 = vpow.pop %v1750
  %v1752 = vadd.f32 %v1751, 1.0
  %v1753 = vrcp.pop %v1752
  %v1754 = vmul.f32 1.0, %v1753
  %v1755 = vtanh.pop %v1748
  %v1756 = vmul.f32 %v1754, %v1666
  %1758 = vrot.lane.b32.xlu0 %v1755, 64
  %v1759 = vpop.permute.xlu0 %1758
  %v1761 = vmul.f32 %v1754, %v1759
  %1763 = vrot.lane.b32.xlu0 %v1761, 32
  %v1764 = vpop.permute.xlu0 %1763
  %v1766 = vadd.f32 %v1756, %v1764
  %v1767 = vtanh.pop %v1766
  %1769 = vrot.lane.b32.xlu0 %v1767, 64
  %v1770 = vpop.permute.xlu0 %1769
  %v1772 = vmul.f32 %v1754, %v1770
  %1774 = vrot.lane.b32.xlu0 %v1772, 32
  %v1775 = vpop.permute.xlu0 %1774
  %v1776 = vsel %vm201, %v1775, 0
  %1778 = vmatprep.subr.mxu0 0.0
  %1779 = vmatpush1.msra.mxu0 %v1034
  %1780 = vmatprep.subr.mxu0 0.0
  %1781 = vmatpush1.msra.mxu0 %v1035
  %1782 = vmatprep.subr.mxu0 0.0
  %1783 = vmatpush1.msra.mxu0 %v1036
  %1784 = vmatprep.subr.mxu0 0.0
  %1785 = vmatpush1.msra.mxu0 %v1037
  %1786 = vmatprep.subr.mxu0 0.0
  %1787 = vmatpush1.msra.mxu0 0.0
  %1788 = vmatprep.subr.mxu0 0.0
  %1789 = vmatpush1.msra.mxu0 0.0
  %1790 = vmatprep.subr.mxu0 0.0
  %1791 = vmatpush1.msra.mxu0 0.0
  %1792 = vmatprep.subr.mxu0 0.0
  %1793 = vmatpush1.msra.mxu0 0.0
  %1794 = vmatprep.subr.mxu0 0.0
  %1795 = vmatpush1.msra.mxu0 0.0
  %1796 = vmatprep.subr.mxu0 0.0
  %1797 = vmatpush1.msra.mxu0 0.0
  %1798 = vmatprep.subr.mxu0 0.0
  %1799 = vmatpush1.msra.mxu0 0.0
  %1800 = vmatprep.subr.mxu0 0.0
  %1801 = vmatpush1.msra.mxu0 0.0
  %1802 = vmatprep.subr.mxu0 0.0
  %1803 = vmatpush1.msra.mxu0 0.0
  %1804 = vmatprep.subr.mxu0 0.0
  %1805 = vmatpush1.msra.mxu0 0.0
  %1806 = vmatprep.subr.mxu0 0.0
  %1807 = vmatpush1.msra.mxu0 0.0
  %1808 = vmatprep.subr.mxu0 0.0
  %1809 = vmatpush1.msra.mxu0 0.0
  %1810 = vmatprep.subr.mxu0 0.0
  %1811 = vmatpush1.msra.mxu0 0.0
  %1812 = vmatprep.subr.mxu0 0.0
  %1813 = vmatpush1.msra.mxu0 0.0
  %1814 = vmatprep.subr.mxu0 0.0
  %1815 = vmatpush1.msra.mxu0 0.0
  %1816 = vmatprep.subr.mxu0 0.0
  %1817 = vmatpush1.msra.mxu0 0.0
  %1818 = vmatprep.subr.mxu0 0.0
  %1819 = vmatpush1.msra.mxu0 0.0
  %1820 = vmatprep.subr.mxu0 0.0
  %1821 = vmatpush1.msra.mxu0 0.0
  %1822 = vmatprep.subr.mxu0 0.0
  %1823 = vmatpush1.msra.mxu0 0.0
  %1824 = vmatprep.subr.mxu0 0.0
  %1825 = vmatpush1.msra.mxu0 0.0
  %1826 = vmatprep.subr.mxu0 0.0
  %1827 = vmatpush1.msra.mxu0 0.0
  %1828 = vmatprep.subr.mxu0 0.0
  %1829 = vmatpush1.msra.mxu0 0.0
  %1830 = vmatprep.subr.mxu0 0.0
  %1831 = vmatpush1.msra.mxu0 0.0
  %1832 = vmatprep.subr.mxu0 0.0
  %1833 = vmatpush1.msra.mxu0 0.0
  %1834 = vmatprep.subr.mxu0 0.0
  %1835 = vmatpush1.msra.mxu0 0.0
  %1836 = vmatprep.subr.mxu0 0.0
  %1837 = vmatpush1.msra.mxu0 0.0
  %1838 = vmatprep.subr.mxu0 0.0
  %1839 = vmatpush1.msra.mxu0 0.0
  %1840 = vmatprep.subr.mxu0 0.0
  %1841 = vmatpush1.msra.mxu0 0.0
  %1842 = vmatprep.mubr.f32.mxu0 0.0
  %1843 = vmatmul.mubr.f32.gmra.mrb[0].mxu0 %v1776
  %v1844 = vpop.f32.mrb[0].mxu0
  %v1845 = vadd.f32 0.0, %v1844
  %v1846 = vpop.f32.mrb[0].mxu0
  %1847 = vdwg.mxu0
  %v1848 = vadd.f32 %v1170, %v1845
  %v1849 = vxor.u32 %v1848, 2147483648
  %v1850 = vmul.f32 %v1849, 1.442695
  %v1851 = vpow.pop %v1850
  %v1852 = vadd.f32 %v1851, 1.0
  %v1853 = vrcp.pop %v1852
  %v1854 = vmul.f32 1.0, %v1853
  %v1855 = vtanh.pop %v1848
  %v1856 = vmul.f32 %v1854, %v1766
  %1858 = vrot.lane.b32.xlu0 %v1855, 64
  %v1859 = vpop.permute.xlu0 %1858
  %v1861 = vmul.f32 %v1854, %v1859
  %1863 = vrot.lane.b32.xlu0 %v1861, 32
  %v1864 = vpop.permute.xlu0 %1863
  %v1866 = vadd.f32 %v1856, %v1864
  %v1867 = vtanh.pop %v1866
  %1869 = vrot.lane.b32.xlu0 %v1867, 64
  %v1870 = vpop.permute.xlu0 %1869
  %v1872 = vmul.f32 %v1854, %v1870
  %1874 = vrot.lane.b32.xlu0 %v1872, 32
  %v1875 = vpop.permute.xlu0 %1874
  %v1876 = vsel %vm201, %v1875, 0
  %1878 = vmatprep.subr.mxu0 0.0
  %1879 = vmatpush1.msra.mxu0 %v1034
  %1880 = vmatprep.subr.mxu0 0.0
  %1881 = vmatpush1.msra.mxu0 %v1035
  %1882 = vmatprep.subr.mxu0 0.0
  %1883 = vmatpush1.msra.mxu0 %v1036
  %1884 = vmatprep.subr.mxu0 0.0
  %1885 = vmatpush1.msra.mxu0 %v1037
  %1886 = vmatprep.subr.mxu0 0.0
  %1887 = vmatpush1.msra.mxu0 0.0
  %1888 = vmatprep.subr.mxu0 0.0
  %1889 = vmatpush1.msra.mxu0 0.0
  %1890 = vmatprep.subr.mxu0 0.0
  %1891 = vmatpush1.msra.mxu0 0.0
  %1892 = vmatprep.subr.mxu0 0.0
  %1893 = vmatpush1.msra.mxu0 0.0
  %1894 = vmatprep.subr.mxu0 0.0
  %1895 = vmatpush1.msra.mxu0 0.0
  %1896 = vmatprep.subr.mxu0 0.0
  %1897 = vmatpush1.msra.mxu0 0.0
  %1898 = vmatprep.subr.mxu0 0.0
  %1899 = vmatpush1.msra.mxu0 0.0
  %1900 = vmatprep.subr.mxu0 0.0
  %1901 = vmatpush1.msra.mxu0 0.0
  %1902 = vmatprep.subr.mxu0 0.0
  %1903 = vmatpush1.msra.mxu0 0.0
  %1904 = vmatprep.subr.mxu0 0.0
  %1905 = vmatpush1.msra.mxu0 0.0
  %1906 = vmatprep.subr.mxu0 0.0
  %1907 = vmatpush1.msra.mxu0 0.0
  %1908 = vmatprep.subr.mxu0 0.0
  %1909 = vmatpush1.msra.mxu0 0.0
  %1910 = vmatprep.subr.mxu0 0.0
  %1911 = vmatpush1.msra.mxu0 0.0
  %1912 = vmatprep.subr.mxu0 0.0
  %1913 = vmatpush1.msra.mxu0 0.0
  %1914 = vmatprep.subr.mxu0 0.0
  %1915 = vmatpush1.msra.mxu0 0.0
  %1916 = vmatprep.subr.mxu0 0.0
  %1917 = vmatpush1.msra.mxu0 0.0
  %1918 = vmatprep.subr.mxu0 0.0
  %1919 = vmatpush1.msra.mxu0 0.0
  %1920 = vmatprep.subr.mxu0 0.0
  %1921 = vmatpush1.msra.mxu0 0.0
  %1922 = vmatprep.subr.mxu0 0.0
  %1923 = vmatpush1.msra.mxu0 0.0
  %1924 = vmatprep.subr.mxu0 0.0
  %1925 = vmatpush1.msra.mxu0 0.0
  %1926 = vmatprep.subr.mxu0 0.0
  %1927 = vmatpush1.msra.mxu0 0.0
  %1928 = vmatprep.subr.mxu0 0.0
  %1929 = vmatpush1.msra.mxu0 0.0
  %1930 = vmatprep.subr.mxu0 0.0
  %1931 = vmatpush1.msra.mxu0 0.0
  %1932 = vmatprep.subr.mxu0 0.0
  %1933 = vmatpush1.msra.mxu0 0.0
  %1934 = vmatprep.subr.mxu0 0.0
  %1935 = vmatpush1.msra.mxu0 0.0
  %1936 = vmatprep.subr.mxu0 0.0
  %1937 = vmatpush1.msra.mxu0 0.0
  %1938 = vmatprep.subr.mxu0 0.0
  %1939 = vmatpush1.msra.mxu0 0.0
  %1940 = vmatprep.subr.mxu0 0.0
  %1941 = vmatpush1.msra.mxu0 0.0
  %1942 = vmatprep.mubr.f32.mxu0 0.0
  %1943 = vmatmul.mubr.f32.gmra.mrb[0].mxu0 %v1876
  %v1944 = vpop.f32.mrb[0].mxu0
  %v1945 = vadd.f32 0.0, %v1944
  %v1946 = vpop.f32.mrb[0].mxu0
  %1947 = vdwg.mxu0
  %v1948 = vadd.f32 %v1175, %v1945
  %v1949 = vxor.u32 %v1948, 2147483648
  %v1950 = vmul.f32 %v1949, 1.442695
  %v1951 = vpow.pop %v1950
  %v1952 = vadd.f32 %v1951, 1.0
  %v1953 = vrcp.pop %v1952
  %v1954 = vmul.f32 1.0, %v1953
  %v1955 = vtanh.pop %v1948
  %v1956 = vmul.f32 %v1954, %v1866
  %1958 = vrot.lane.b32.xlu0 %v1955, 64
  %v1959 = vpop.permute.xlu0 %1958
  %v1961 = vmul.f32 %v1954, %v1959
  %1963 = vrot.lane.b32.xlu0 %v1961, 32
  %v1964 = vpop.permute.xlu0 %1963
  %v1966 = vadd.f32 %v1956, %v1964
  %v1967 = vtanh.pop %v1966
  %1969 = vrot.lane.b32.xlu0 %v1967, 64
  %v1970 = vpop.permute.xlu0 %1969
  %v1972 = vmul.f32 %v1954, %v1970
  %v1973 = vmax.f32 %v1972, 0.0
  %v1974 = vld [vmem:[%s7] sm:$0xff]
  %v1975 = vld [vmem:[%s7 + $0x8] sm:$0xff]
  %v1976 = vld [vmem:[%s7 + $0x10] sm:$0xff]
  %v1977 = vld [vmem:[%s7 + $0x18] sm:$0xff]
  %v1978 = vld [vmem:[%s8] sm:$0x1]
  %v1980 = vlaneseq
  %v1981 = vshrl.u32 %v1980, 7
  %v1982 = vsub.s32 0, %v1981
  %v1983 = vrot.slane %v1978, %v1982
  %1986 = vrot.lane.b32.xlu0 %v1973, 32
  %v1987 = vpop.permute.xlu0 %1986
  %v1988 = vsel %vm201, %v1987, 0
  %1990 = vmatprep.subr.mxu0 0.0
  %1991 = vmatpush1.msra.mxu0 %v1974
  %1992 = vmatprep.subr.mxu0 0.0
  %1993 = vmatpush1.msra.mxu0 %v1975
  %1994 = vmatprep.subr.mxu0 0.0
  %1995 = vmatpush1.msra.mxu0 %v1976
  %1996 = vmatprep.subr.mxu0 0.0
  %1997 = vmatpush1.msra.mxu0 %v1977
  %1998 = vmatprep.subr.mxu0 0.0
  %1999 = vmatpush1.msra.mxu0 0.0
  %2000 = vmatprep.subr.mxu0 0.0
  %2001 = vmatpush1.msra.mxu0 0.0
  %2002 = vmatprep.subr.mxu0 0.0
  %2003 = vmatpush1.msra.mxu0 0.0
  %2004 = vmatprep.subr.mxu0 0.0
  %2005 = vmatpush1.msra.mxu0 0.0
  %2006 = vmatprep.subr.mxu0 0.0
  %2007 = vmatpush1.msra.mxu0 0.0
  %2008 = vmatprep.subr.mxu0 0.0
  %2009 = vmatpush1.msra.mxu0 0.0
  %2010 = vmatprep.subr.mxu0 0.0
  %2011 = vmatpush1.msra.mxu0 0.0
  %2012 = vmatprep.subr.mxu0 0.0
  %2013 = vmatpush1.msra.mxu0 0.0
  %2014 = vmatprep.subr.mxu0 0.0
  %2015 = vmatpush1.msra.mxu0 0.0
  %2016 = vmatprep.subr.mxu0 0.0
  %2017 = vmatpush1.msra.mxu0 0.0
  %2018 = vmatprep.subr.mxu0 0.0
  %2019 = vmatpush1.msra.mxu0 0.0
  %2020 = vmatprep.subr.mxu0 0.0
  %2021 = vmatpush1.msra.mxu0 0.0
  %2022 = vmatprep.subr.mxu0 0.0
  %2023 = vmatpush1.msra.mxu0 0.0
  %2024 = vmatprep.subr.mxu0 0.0
  %2025 = vmatpush1.msra.mxu0 0.0
  %2026 = vmatprep.subr.mxu0 0.0
  %2027 = vmatpush1.msra.mxu0 0.0
  %2028 = vmatprep.subr.mxu0 0.0
  %2029 = vmatpush1.msra.mxu0 0.0
  %2030 = vmatprep.subr.mxu0 0.0
  %2031 = vmatpush1.msra.mxu0 0.0
  %2032 = vmatprep.subr.mxu0 0.0
  %2033 = vmatpush1.msra.mxu0 0.0
  %2034 = vmatprep.subr.mxu0 0.0
  %2035 = vmatpush1.msra.mxu0 0.0
  %2036 = vmatprep.subr.mxu0 0.0
  %2037 = vmatpush1.msra.mxu0 0.0
  %2038 = vmatprep.subr.mxu0 0.0
  %2039 = vmatpush1.msra.mxu0 0.0
  %2040 = vmatprep.subr.mxu0 0.0
  %2041 = vmatpush1.msra.mxu0 0.0
  %2042 = vmatprep.subr.mxu0 0.0
  %2043 = vmatpush1.msra.mxu0 0.0
  %2044 = vmatprep.subr.mxu0 0.0
  %2045 = vmatpush1.msra.mxu0 0.0
  %2046 = vmatprep.subr.mxu0 0.0
  %2047 = vmatpush1.msra.mxu0 0.0
  %2048 = vmatprep.subr.mxu0 0.0
  %2049 = vmatpush1.msra.mxu0 0.0
  %2050 = vmatprep.subr.mxu0 0.0
  %2051 = vmatpush1.msra.mxu0 0.0
  %2052 = vmatprep.subr.mxu0 0.0
  %2053 = vmatpush1.msra.mxu0 0.0
  %2054 = vmatprep.mubr.f32.mxu0 0.0
  %2055 = vmatmul.mubr.f32.gmra.mrb[0].mxu0 %v1988
  %v2056 = vpop.f32.mrb[0].mxu0
  %v2057 = vadd.f32 %v1983, %v2056
  %v2058 = vpop.f32.mrb[0].mxu0
  %2059 = vdwg.mxu0
  %v2060 = vmax.f32 %v2057, 0.0
  %v2061 = vld [vmem:[%s9] sm:$0xff]
  %v2062 = vld [vmem:[%s9 + $0x8] sm:$0xff]
  %v2063 = vld [vmem:[%s9 + $0x10] sm:$0xff]
  %v2064 = vld [vmem:[%s9 + $0x18] sm:$0xff]
  %v2065 = vld [vmem:[%s9 + $0x20] sm:$0xff]
  %v2066 = vld [vmem:[%s9 + $0x28] sm:$0xff]
  %v2067 = vld [vmem:[%s9 + $0x30] sm:$0xff]
  %v2068 = vld [vmem:[%s9 + $0x38] sm:$0xff]
  %v2069 = vld [vmem:[%s9 + $0x40] sm:$0xff]
  %v2070 = vld [vmem:[%s9 + $0x48] sm:$0xff]
  %v2071 = vld [vmem:[%s9 + $0x50] sm:$0xff]
  %v2072 = vld [vmem:[%s9 + $0x58] sm:$0xff]
  %v2073 = vld [vmem:[%s9 + $0x60] sm:$0xff]
  %v2074 = vld [vmem:[%s9 + $0x68] sm:$0xff]
  %v2075 = vld [vmem:[%s9 + $0x70] sm:$0xff]
  %v2076 = vld [vmem:[%s9 + $0x78] sm:$0xff]
  %v2077 = vld [vmem:[%s10] sm:$0x1]
  %v2079 = vlaneseq
  %v2080 = vshrl.u32 %v2079, 7
  %v2081 = vsub.s32 0, %v2080
  %v2082 = vrot.slane %v2077, %v2081
  %2084 = vmatprep.subr.mxu0 0.0
  %2085 = vmatpush1.msra.mxu0 %v2061
  %2086 = vmatprep.subr.mxu0 0.0
  %2087 = vmatpush1.msra.mxu0 %v2062
  %2088 = vmatprep.subr.mxu0 0.0
  %2089 = vmatpush1.msra.mxu0 %v2063
  %2090 = vmatprep.subr.mxu0 0.0
  %2091 = vmatpush1.msra.mxu0 %v2064
  %2092 = vmatprep.subr.mxu0 0.0
  %2093 = vmatpush1.msra.mxu0 %v2065
  %2094 = vmatprep.subr.mxu0 0.0
  %2095 = vmatpush1.msra.mxu0 %v2066
  %2096 = vmatprep.subr.mxu0 0.0
  %2097 = vmatpush1.msra.mxu0 %v2067
  %2098 = vmatprep.subr.mxu0 0.0
  %2099 = vmatpush1.msra.mxu0 %v2068
  %2100 = vmatprep.subr.mxu0 0.0
  %2101 = vmatpush1.msra.mxu0 %v2069
  %2102 = vmatprep.subr.mxu0 0.0
  %2103 = vmatpush1.msra.mxu0 %v2070
  %2104 = vmatprep.subr.mxu0 0.0
  %2105 = vmatpush1.msra.mxu0 %v2071
  %2106 = vmatprep.subr.mxu0 0.0
  %2107 = vmatpush1.msra.mxu0 %v2072
  %2108 = vmatprep.subr.mxu0 0.0
  %2109 = vmatpush1.msra.mxu0 %v2073
  %2110 = vmatprep.subr.mxu0 0.0
  %2111 = vmatpush1.msra.mxu0 %v2074
  %2112 = vmatprep.subr.mxu0 0.0
  %2113 = vmatpush1.msra.mxu0 %v2075
  %2114 = vmatprep.subr.mxu0 0.0
  %2115 = vmatpush1.msra.mxu0 %v2076
  %2116 = vmatprep.subr.mxu0 0.0
  %2117 = vmatpush1.msra.mxu0 0.0
  %2118 = vmatprep.subr.mxu0 0.0
  %2119 = vmatpush1.msra.mxu0 0.0
  %2120 = vmatprep.subr.mxu0 0.0
  %2121 = vmatpush1.msra.mxu0 0.0
  %2122 = vmatprep.subr.mxu0 0.0
  %2123 = vmatpush1.msra.mxu0 0.0
  %2124 = vmatprep.subr.mxu0 0.0
  %2125 = vmatpush1.msra.mxu0 0.0
  %2126 = vmatprep.subr.mxu0 0.0
  %2127 = vmatpush1.msra.mxu0 0.0
  %2128 = vmatprep.subr.mxu0 0.0
  %2129 = vmatpush1.msra.mxu0 0.0
  %2130 = vmatprep.subr.mxu0 0.0
  %2131 = vmatpush1.msra.mxu0 0.0
  %2132 = vmatprep.subr.mxu0 0.0
  %2133 = vmatpush1.msra.mxu0 0.0
  %2134 = vmatprep.subr.mxu0 0.0
  %2135 = vmatpush1.msra.mxu0 0.0
  %2136 = vmatprep.subr.mxu0 0.0
  %2137 = vmatpush1.msra.mxu0 0.0
  %2138 = vmatprep.subr.mxu0 0.0
  %2139 = vmatpush1.msra.mxu0 0.0
  %2140 = vmatprep.subr.mxu0 0.0
  %2141 = vmatpush1.msra.mxu0 0.0
  %2142 = vmatprep.subr.mxu0 0.0
  %2143 = vmatpush1.msra.mxu0 0.0
  %2144 = vmatprep.subr.mxu0 0.0
  %2145 = vmatpush1.msra.mxu0 0.0
  %2146 = vmatprep.subr.mxu0 0.0
  %2147 = vmatpush1.msra.mxu0 0.0
  %2148 = vmatprep.mubr.f32.mxu0 0.0
  %2149 = vmatmul.mubr.f32.gmra.mrb[0].mxu0 %v2060
  %v2150 = vpop.f32.mrb[0].mxu0
  %v2151 = vadd.f32 %v2082, %v2150
  %v2152 = vpop.f32.mrb[0].mxu0
  %2153 = vdwg.mxu0
  %v2154 = vmax.f32 %v2151, 0.0
  %v2155 = vld [vmem:[%s11] sm:$0xff]
  %v2156 = vld [vmem:[%s11 + $0x8] sm:$0xff]
  %v2157 = vld [vmem:[%s11 + $0x10] sm:$0xff]
  %v2158 = vld [vmem:[%s11 + $0x18] sm:$0xff]
  %v2159 = vld [vmem:[%s11 + $0x20] sm:$0xff]
  %v2160 = vld [vmem:[%s11 + $0x28] sm:$0xff]
  %v2161 = vld [vmem:[%s11 + $0x30] sm:$0xff]
  %v2162 = vld [vmem:[%s11 + $0x38] sm:$0xff]
  %v2163 = vld [vmem:[%s11 + $0x40] sm:$0xff]
  %v2164 = vld [vmem:[%s11 + $0x48] sm:$0xff]
  %v2165 = vld [vmem:[%s11 + $0x50] sm:$0xff]
  %v2166 = vld [vmem:[%s11 + $0x58] sm:$0xff]
  %v2167 = vld [vmem:[%s11 + $0x60] sm:$0xff]
  %v2168 = vld [vmem:[%s11 + $0x68] sm:$0xff]
  %v2169 = vld [vmem:[%s11 + $0x70] sm:$0xff]
  %v2170 = vld [vmem:[%s11 + $0x78] sm:$0xff]
  %v2171 = vld [vmem:[%s12] sm:$0x1]
  %v2173 = vlaneseq
  %v2174 = vshrl.u32 %v2173, 7
  %v2175 = vsub.s32 0, %v2174
  %v2176 = vrot.slane %v2171, %v2175
  %2178 = vmatprep.subr.mxu0 0.0
  %2179 = vmatpush1.msra.mxu0 %v2155
  %2180 = vmatprep.subr.mxu0 0.0
  %2181 = vmatpush1.msra.mxu0 %v2156
  %2182 = vmatprep.subr.mxu0 0.0
  %2183 = vmatpush1.msra.mxu0 %v2157
  %2184 = vmatprep.subr.mxu0 0.0
  %2185 = vmatpush1.msra.mxu0 %v2158
  %2186 = vmatprep.subr.mxu0 0.0
  %2187 = vmatpush1.msra.mxu0 %v2159
  %2188 = vmatprep.subr.mxu0 0.0
  %2189 = vmatpush1.msra.mxu0 %v2160
  %2190 = vmatprep.subr.mxu0 0.0
  %2191 = vmatpush1.msra.mxu0 %v2161
  %2192 = vmatprep.subr.mxu0 0.0
  %2193 = vmatpush1.msra.mxu0 %v2162
  %2194 = vmatprep.subr.mxu0 0.0
  %2195 = vmatpush1.msra.mxu0 %v2163
  %2196 = vmatprep.subr.mxu0 0.0
  %2197 = vmatpush1.msra.mxu0 %v2164
  %2198 = vmatprep.subr.mxu0 0.0
  %2199 = vmatpush1.msra.mxu0 %v2165
  %2200 = vmatprep.subr.mxu0 0.0
  %2201 = vmatpush1.msra.mxu0 %v2166
  %2202 = vmatprep.subr.mxu0 0.0
  %2203 = vmatpush1.msra.mxu0 %v2167
  %2204 = vmatprep.subr.mxu0 0.0
  %2205 = vmatpush1.msra.mxu0 %v2168
  %2206 = vmatprep.subr.mxu0 0.0
  %2207 = vmatpush1.msra.mxu0 %v2169
  %2208 = vmatprep.subr.mxu0 0.0
  %2209 = vmatpush1.msra.mxu0 %v2170
  %2210 = vmatprep.subr.mxu0 0.0
  %2211 = vmatpush1.msra.mxu0 0.0
  %2212 = vmatprep.subr.mxu0 0.0
  %2213 = vmatpush1.msra.mxu0 0.0
  %2214 = vmatprep.subr.mxu0 0.0
  %2215 = vmatpush1.msra.mxu0 0.0
  %2216 = vmatprep.subr.mxu0 0.0
  %2217 = vmatpush1.msra.mxu0 0.0
  %2218 = vmatprep.subr.mxu0 0.0
  %2219 = vmatpush1.msra.mxu0 0.0
  %2220 = vmatprep.subr.mxu0 0.0
  %2221 = vmatpush1.msra.mxu0 0.0
  %2222 = vmatprep.subr.mxu0 0.0
  %2223 = vmatpush1.msra.mxu0 0.0
  %2224 = vmatprep.subr.mxu0 0.0
  %2225 = vmatpush1.msra.mxu0 0.0
  %2226 = vmatprep.subr.mxu0 0.0
  %2227 = vmatpush1.msra.mxu0 0.0
  %2228 = vmatprep.subr.mxu0 0.0
  %2229 = vmatpush1.msra.mxu0 0.0
  %2230 = vmatprep.subr.mxu0 0.0
  %2231 = vmatpush1.msra.mxu0 0.0
  %2232 = vmatprep.subr.mxu0 0.0
  %2233 = vmatpush1.msra.mxu0 0.0
  %2234 = vmatprep.subr.mxu0 0.0
  %2235 = vmatpush1.msra.mxu0 0.0
  %2236 = vmatprep.subr.mxu0 0.0
  %2237 = vmatpush1.msra.mxu0 0.0
  %2238 = vmatprep.subr.mxu0 0.0
  %2239 = vmatpush1.msra.mxu0 0.0
  %2240 = vmatprep.subr.mxu0 0.0
  %2241 = vmatpush1.msra.mxu0 0.0
  %2242 = vmatprep.mubr.f32.mxu0 0.0
  %2243 = vmatmul.mubr.f32.gmra.mrb[0].mxu0 %v2154
  %v2244 = vpop.f32.mrb[0].mxu0
  %v2245 = vadd.f32 %v2176, %v2244
  %v2246 = vpop.f32.mrb[0].mxu0
  %2247 = vdwg.mxu0
  %v2248 = vmax.f32 %v2245, 0.0
  %v2249 = vld [vmem:[%s13] sm:$0xff]
  %v2250 = vld [vmem:[%s13 + $0x8] sm:$0xff]
  %v2251 = vld [vmem:[%s13 + $0x10] sm:$0xff]
  %v2252 = vld [vmem:[%s13 + $0x18] sm:$0xff]
  %v2253 = vld [vmem:[%s13 + $0x20] sm:$0xff]
  %v2254 = vld [vmem:[%s13 + $0x28] sm:$0xff]
  %v2255 = vld [vmem:[%s13 + $0x30] sm:$0xff]
  %v2256 = vld [vmem:[%s13 + $0x38] sm:$0xff]
  %v2257 = vld [vmem:[%s13 + $0x40] sm:$0xff]
  %v2258 = vld [vmem:[%s13 + $0x48] sm:$0xff]
  %v2259 = vld [vmem:[%s13 + $0x50] sm:$0xff]
  %v2260 = vld [vmem:[%s13 + $0x58] sm:$0xff]
  %v2261 = vld [vmem:[%s13 + $0x60] sm:$0xff]
  %v2262 = vld [vmem:[%s13 + $0x68] sm:$0xff]
  %v2263 = vld [vmem:[%s13 + $0x70] sm:$0xff]
  %v2264 = vld [vmem:[%s13 + $0x78] sm:$0xff]
  %v2265 = vld [vmem:[%s14] sm:$0x1]
  %v2267 = vlaneseq
  %v2268 = vshrl.u32 %v2267, 7
  %v2269 = vsub.s32 0, %v2268
  %v2270 = vrot.slane %v2265, %v2269
  %2272 = vmatprep.subr.mxu0 0.0
  %2273 = vmatpush1.msra.mxu0 %v2249
  %2274 = vmatprep.subr.mxu0 0.0
  %2275 = vmatpush1.msra.mxu0 %v2250
  %2276 = vmatprep.subr.mxu0 0.0
  %2277 = vmatpush1.msra.mxu0 %v2251
  %2278 = vmatprep.subr.mxu0 0.0
  %2279 = vmatpush1.msra.mxu0 %v2252
  %2280 = vmatprep.subr.mxu0 0.0
  %2281 = vmatpush1.msra.mxu0 %v2253
  %2282 = vmatprep.subr.mxu0 0.0
  %2283 = vmatpush1.msra.mxu0 %v2254
  %2284 = vmatprep.subr.mxu0 0.0
  %2285 = vmatpush1.msra.mxu0 %v2255
  %2286 = vmatprep.subr.mxu0 0.0
  %2287 = vmatpush1.msra.mxu0 %v2256
  %2288 = vmatprep.subr.mxu0 0.0
  %2289 = vmatpush1.msra.mxu0 %v2257
  %2290 = vmatprep.subr.mxu0 0.0
  %2291 = vmatpush1.msra.mxu0 %v2258
  %2292 = vmatprep.subr.mxu0 0.0
  %2293 = vmatpush1.msra.mxu0 %v2259
  %2294 = vmatprep.subr.mxu0 0.0
  %2295 = vmatpush1.msra.mxu0 %v2260
  %2296 = vmatprep.subr.mxu0 0.0
  %2297 = vmatpush1.msra.mxu0 %v2261
  %2298 = vmatprep.subr.mxu0 0.0
  %2299 = vmatpush1.msra.mxu0 %v2262
  %2300 = vmatprep.subr.mxu0 0.0
  %2301 = vmatpush1.msra.mxu0 %v2263
  %2302 = vmatprep.subr.mxu0 0.0
  %2303 = vmatpush1.msra.mxu0 %v2264
  %2304 = vmatprep.subr.mxu0 0.0
  %2305 = vmatpush1.msra.mxu0 0.0
  %2306 = vmatprep.subr.mxu0 0.0
  %2307 = vmatpush1.msra.mxu0 0.0
  %2308 = vmatprep.subr.mxu0 0.0
  %2309 = vmatpush1.msra.mxu0 0.0
  %2310 = vmatprep.subr.mxu0 0.0
  %2311 = vmatpush1.msra.mxu0 0.0
  %2312 = vmatprep.subr.mxu0 0.0
  %2313 = vmatpush1.msra.mxu0 0.0
  %2314 = vmatprep.subr.mxu0 0.0
  %2315 = vmatpush1.msra.mxu0 0.0
  %2316 = vmatprep.subr.mxu0 0.0
  %2317 = vmatpush1.msra.mxu0 0.0
  %2318 = vmatprep.subr.mxu0 0.0
  %2319 = vmatpush1.msra.mxu0 0.0
  %2320 = vmatprep.subr.mxu0 0.0
  %2321 = vmatpush1.msra.mxu0 0.0
  %2322 = vmatprep.subr.mxu0 0.0
  %2323 = vmatpush1.msra.mxu0 0.0
  %2324 = vmatprep.subr.mxu0 0.0
  %2325 = vmatpush1.msra.mxu0 0.0
  %2326 = vmatprep.subr.mxu0 0.0
  %2327 = vmatpush1.msra.mxu0 0.0
  %2328 = vmatprep.subr.mxu0 0.0
  %2329 = vmatpush1.msra.mxu0 0.0
  %2330 = vmatprep.subr.mxu0 0.0
  %2331 = vmatpush1.msra.mxu0 0.0
  %2332 = vmatprep.subr.mxu0 0.0
  %2333 = vmatpush1.msra.mxu0 0.0
  %2334 = vmatprep.subr.mxu0 0.0
  %2335 = vmatpush1.msra.mxu0 0.0
  %2336 = vmatprep.mubr.f32.mxu0 0.0
  %2337 = vmatmul.mubr.f32.gmra.mrb[0].mxu0 %v2248
  %v2338 = vpop.f32.mrb[0].mxu0
  %v2339 = vadd.f32 %v2270, %v2338
  %v2340 = vpop.f32.mrb[0].mxu0
  %2341 = vdwg.mxu0
  %2342 = vst [vmem:[%s15] sm:$0xff] %v2339
  // Predicated region
  $region62: #{lstm_model_forward.1} parent=0 // pred_check
    _
  $region63: #{lstm_model_forward.1} parent=0 // pred_check_branch
    %2344 = sbr.rel (0) target = $region65
  $region64: #{lstm_model_forward.1} parent=0 // pred_region
    _
  $region65: #{lstm_model_forward.1} parent=0 // pred_fallthru
    _
  // Predicated region
  $region66: #{lstm_model_forward.1} parent=0 // pred_check
    _
  $region67: #{lstm_model_forward.1} parent=0 // pred_check_branch
    %2346 = sbr.rel (0) target = $region69
  $region68: #{lstm_model_forward.1} parent=0 // pred_region
    _
  $region69: #{lstm_model_forward.1} parent=0 // pred_fallthru
    _

</llo_original>
